<compile_context>
chip_gen: v7x
topology: tpu7x:2x2x1
jax: 0.10.0
libtpu: 0.0.40
codegen_flags: <defaults>
</compile_context>

<pallas_src>
import functools
import math

import jax
import jax.numpy as jnp
import numpy as np
from jax.experimental import pallas as pl
from jax.experimental.pallas import tpu as pltpu


# ----------------------------- Pallas kernels -----------------------------

def _mha_ln_kernel(*refs, num_heads, head_dim, eps, mask_mode, q_tile):
    """Fused multi-head attention + residual add + LayerNorm for one (batch, q-tile)."""
    if mask_mode == "array":
        (xq_ref, xkv_ref, mask_ref, wq_ref, wkv_ref, wo_ref,
         g_ref, beta_ref, o_ref, acc_ref) = refs
    else:
        (xq_ref, xkv_ref, wq_ref, wkv_ref, wo_ref,
         g_ref, beta_ref, o_ref, acc_ref) = refs
        mask_ref = None

    E = num_heads * head_dim
    xq = xq_ref[0]                                    # (tq, E)  f32; also the residual
    xkv = xkv_ref[0]                                  # (Skv, E) f32
    tq = xq.shape[0]
    skv = xkv.shape[0]

    # Wide projections on the MXU (bf16 in, f32 accumulate).  K and V share one
    # packed (E, 2E) weight -> one wide matmul instead of two narrow launches.
    q = jnp.dot(xq.astype(jnp.bfloat16), wq_ref[...],
                preferred_element_type=jnp.float32)
    kv = jnp.dot(xkv.astype(jnp.bfloat16), wkv_ref[...],
                 preferred_element_type=jnp.float32)
    k = kv[:, :E]
    v = kv[:, E:]

    # Fold 1/sqrt(head_dim) into q: O(tq*E) multiplies instead of O(tq*Skv) divides.
    q = q * jnp.float32(1.0 / math.sqrt(float(head_dim)))

    # Boolean "keep" mask; the causal case is generated in-kernel (no mask DMA).
    if mask_mode == "causal":
        q0 = pl.program_id(1) * q_tile
        rows = q0 + jax.lax.broadcasted_iota(jnp.int32, (tq, skv), 0)
        cols = jax.lax.broadcasted_iota(jnp.int32, (tq, skv), 1)
        keep = rows >= cols
    elif mask_mode == "array":
        keep = mask_ref[0] != 0
    else:
        keep = None

    # Per-head attention with the output projection folded in:
    #     out = sum_h softmax(q_h k_h^T) v_h @ Wo[h]
    # accumulated into a VMEM scratch (no per-head list, no concat_heads).
    acc_ref[...] = jnp.zeros_like(acc_ref)
    for h in range(num_heads):                         # static unroll (small H)
        sl = slice(h * head_dim, (h + 1) * head_dim)
        qh, kh, vh = q[:, sl], k[:, sl], v[:, sl]
        s = jnp.dot(qh, kh.T, preferred_element_type=jnp.float32)      # (tq, Skv) f32
        if keep is not None:
            s = jnp.where(keep, s, jnp.float32(-1e30))  # finite -> no NaN on empty rows
        m = jnp.max(s, axis=-1, keepdims=True)
        p = jnp.exp(s - m)
        p = p * pl.reciprocal(jnp.sum(p, axis=-1, keepdims=True), approx=True)
        ah = jnp.dot(p.astype(jnp.bfloat16), vh.astype(jnp.bfloat16),
                     preferred_element_type=jnp.float32)                # (tq, hd)
        acc_ref[...] += jnp.dot(ah.astype(jnp.bfloat16), wo_ref[h],
                                preferred_element_type=jnp.float32)     # (tq, E)

    # Fused residual add + LayerNorm (biased variance, like torch).
    y = acc_ref[...] + xq
    mu = jnp.mean(y, axis=-1, keepdims=True)
    var = jnp.mean((y - mu) ** 2, axis=-1, keepdims=True)
    o_ref[0] = (y - mu) * jax.lax.rsqrt(var + eps) * g_ref[...] + beta_ref[...]


def _ffn_ln_kernel(x_ref, w1_ref, b1_ref, w2_ref, b2_ref, g_ref, beta_ref, o_ref, *, eps):
    """Fused position-wise FFN (Linear->ReLU->Linear) + residual add + LayerNorm."""
    x = x_ref[0]                                       # (ts, E) f32
    h = jnp.dot(x.astype(jnp.bfloat16), w1_ref[...],
                preferred_element_type=jnp.float32) + b1_ref[...]
    h = jnp.maximum(h, 0.0)
    f = jnp.dot(h.astype(jnp.bfloat16), w2_ref[...],
                preferred_element_type=jnp.float32) + b2_ref[...]
    y = f + x
    mu = jnp.mean(y, axis=-1, keepdims=True)
    var = jnp.mean((y - mu) ** 2, axis=-1, keepdims=True)
    o_ref[0] = (y - mu) * jax.lax.rsqrt(var + eps) * g_ref[...] + beta_ref[...]


# ----------------------------- wrappers -----------------------------------

def _seq_tile(S):
    # Tile long sequences (keeps per-step VMEM small on v7x's 64 MiB); small / odd
    # sequences use the whole extent (satisfies the (8,128) full-dim rule).
    return 256 if (S > 256 and S % 256 == 0) else S


_COMPILER_PARAMS = pltpu.CompilerParams(
    dimension_semantics=("parallel", "parallel"),
    vmem_limit_bytes=64 * 1024 * 1024)


def mha_add_ln(x_q, x_kv, mask, wq, wkv, wo_heads, ln_g, ln_b, num_heads, eps=1e-5):
    """out = LayerNorm(MHA(x_q, x_kv, x_kv, mask) + x_q)."""
    B, Sq, E = x_q.shape
    Skv = x_kv.shape[1]
    head_dim = E // num_heads
    tq = _seq_tile(Sq)

    if mask is None:
        mask_mode = "none"
    elif isinstance(mask, str):
        assert mask == "causal"
        mask_mode = "causal"
    else:
        mask_mode = "array"
        mask = (mask != 0).astype(jnp.int8)            # never DMA a float32 mask

    kernel = functools.partial(_mha_ln_kernel, num_heads=num_heads,
                               head_dim=head_dim, eps=eps,
                               mask_mode=mask_mode, q_tile=tq)

    in_specs = [
        pl.BlockSpec((1, tq, E), lambda b, t: (b, t, 0)),        # queries / residual
        pl.BlockSpec((1, Skv, E), lambda b, t: (b, 0, 0)),       # key/value source
    ]
    args = [x_q, x_kv]
    if mask_mode == "array":
        in_specs.append(pl.BlockSpec((1, tq, Skv), lambda b, t: (b, t, 0)))
        args.append(mask)
    in_specs += [
        pl.BlockSpec((E, E), lambda b, t: (0, 0)),               # Wq            (bf16)
        pl.BlockSpec((E, 2 * E), lambda b, t: (0, 0)),           # [Wk | Wv]     (bf16)
        pl.BlockSpec((num_heads, head_dim, E), lambda b, t: (0, 0, 0)),  # Wo per head
        pl.BlockSpec((1, E), lambda b, t: (0, 0)),               # LN gamma
        pl.BlockSpec((1, E), lambda b, t: (0, 0)),               # LN beta
    ]
    args += [wq, wkv, wo_heads, ln_g, ln_b]

    # TODO(synk): for very long sequences, add flash-style online-softmax tiling
    # over Skv instead of holding the full K/V slab per batch element.
    return pl.pallas_call(
        kernel,
        out_shape=jax.ShapeDtypeStruct((B, Sq, E), jnp.float32),
        grid=(B, Sq // tq),
        in_specs=in_specs,
        out_specs=pl.BlockSpec((1, tq, E), lambda b, t: (b, t, 0)),
        scratch_shapes=[pltpu.VMEM((tq, E), jnp.float32)],       # per-head accumulator
        compiler_params=_COMPILER_PARAMS,
    )(*args)


def ffn_add_ln(x, w1, b1, w2, b2, ln_g, ln_b, eps=1e-5):
    """out = LayerNorm(FFN(x) + x)."""
    B, S, E = x.shape
    F = w1.shape[1]
    ts = _seq_tile(S)
    kernel = functools.partial(_ffn_ln_kernel, eps=eps)
    return pl.pallas_call(
        kernel,
        out_shape=jax.ShapeDtypeStruct((B, S, E), jnp.float32),
        grid=(B, S // ts),
        in_specs=[
            pl.BlockSpec((1, ts, E), lambda b, t: (b, t, 0)),
            pl.BlockSpec((E, F), lambda b, t: (0, 0)),
            pl.BlockSpec((1, F), lambda b, t: (0, 0)),
            pl.BlockSpec((F, E), lambda b, t: (0, 0)),
            pl.BlockSpec((1, E), lambda b, t: (0, 0)),
            pl.BlockSpec((1, E), lambda b, t: (0, 0)),
            pl.BlockSpec((1, E), lambda b, t: (0, 0)),
        ],
        out_specs=pl.BlockSpec((1, ts, E), lambda b, t: (b, t, 0)),
        compiler_params=_COMPILER_PARAMS,
    )(x, w1, b1, w2, b2, ln_g, ln_b)


# ----------------------------- parameters ----------------------------------

def make_positional_encoding(embedding_dim, max_sequence_length):
    position = jnp.arange(0, max_sequence_length, dtype=jnp.float32)[:, None]
    div_term = jnp.exp(jnp.arange(0, embedding_dim, 2, dtype=jnp.float32)
                       * -(jnp.log(10000.0) / embedding_dim))
    pe = jnp.zeros((max_sequence_length, embedding_dim), jnp.float32)
    pe = pe.at[:, 0::2].set(jnp.sin(position * div_term))
    pe = pe.at[:, 1::2].set(jnp.cos(position * div_term))
    return pe


def init_params(key, vocab_size, embedding_dim, max_seq, num_heads, ff_dim, num_layers):
    E, H = embedding_dim, num_heads
    hd = E // H

    def nrm(k, shape, scale, dtype=jnp.float32):
        return (scale * jax.random.normal(k, shape)).astype(dtype)

    keys = jax.random.split(key, 1 + num_layers)
    params = {
        "emb": nrm(keys[0], (vocab_size, E), 1.0),               # nn.Embedding ~ N(0,1)
        "pe": make_positional_encoding(E, max_seq),
        "layers": [],
    }
    ws = 1.0 / math.sqrt(E)
    fs = 1.0 / math.sqrt(ff_dim)
    for li in range(num_layers):
        lk = jax.random.split(keys[1 + li], 12)

        def attn_weights(k0, k1, k2, k3):
            wq = nrm(k0, (E, E), ws)
            wk = nrm(k1, (E, E), ws)
            wv = nrm(k2, (E, E), ws)
            wo = nrm(k3, (E, E), ws)
            return (wq.astype(jnp.bfloat16),                       # (E, E)
                    jnp.concatenate([wk, wv], axis=1).astype(jnp.bfloat16),  # (E, 2E)
                    wo.reshape(H, hd, E).astype(jnp.bfloat16))     # per-head Wo
        sa_wq, sa_wkv, sa_wo = attn_weights(lk[0], lk[1], lk[2], lk[3])
        ca_wq, ca_wkv, ca_wo = attn_weights(lk[4], lk[5], lk[6], lk[7])

        layer = {
            "sa_wq": sa_wq, "sa_wkv": sa_wkv, "sa_wo": sa_wo,
            "ca_wq": ca_wq, "ca_wkv": ca_wkv, "ca_wo": ca_wo,
            "ff_w1": nrm(lk[8], (E, ff_dim), ws, jnp.bfloat16),
            "ff_b1": nrm(lk[9], (1, ff_dim), ws),
            "ff_w2": nrm(lk[10], (ff_dim, E), fs, jnp.bfloat16),
            "ff_b2": nrm(lk[11], (1, E), fs),
            "ln1_g": jnp.ones((1, E), jnp.float32), "ln1_b": jnp.zeros((1, E), jnp.float32),
            "ln2_g": jnp.ones((1, E), jnp.float32), "ln2_b": jnp.zeros((1, E), jnp.float32),
            "ln3_g": jnp.ones((1, E), jnp.float32), "ln3_b": jnp.zeros((1, E), jnp.float32),
        }
        params["layers"].append(layer)
    return params


# ----------------------------- Decoder forward ------------------------------

def decoder_forward(params, tokens, num_heads, encoder_outputs=None,
                    self_mask=None, cross_mask=None):
    # InputEmbedding + PositionalEncoding (glue: gather + add; dropout == identity).
    x = params["emb"][tokens].astype(jnp.float32)                # (B, S, E)
    S = x.shape[1]
    x = x + params["pe"][:S, :][None, :, :]

    for lp in params["layers"]:
        x = mha_add_ln(x, x, self_mask, lp["sa_wq"], lp["sa_wkv"], lp["sa_wo"],
                       lp["ln1_g"], lp["ln1_b"], num_heads)
        if encoder_outputs is not None:
            x = mha_add_ln(x, encoder_outputs, cross_mask, lp["ca_wq"], lp["ca_wkv"],
                           lp["ca_wo"], lp["ln2_g"], lp["ln2_b"], num_heads)
        x = ffn_add_ln(x, lp["ff_w1"], lp["ff_b1"], lp["ff_w2"], lp["ff_b2"],
                       lp["ln3_g"], lp["ln3_b"])
    return x


# ----------------------------- pure-JAX reference ---------------------------

def _ref_mha(x_q, x_kv, keep, wq, wk, wv, wo, num_heads):
    B, Sq, E = x_q.shape
    hd = E // num_heads
    q = (x_q @ wq).reshape(B, Sq, num_heads, hd).transpose(0, 2, 1, 3)
    k = (x_kv @ wk).reshape(B, -1, num_heads, hd).transpose(0, 2, 1, 3)
    v = (x_kv @ wv).reshape(B, -1, num_heads, hd).transpose(0, 2, 1, 3)
    s = (q @ k.transpose(0, 1, 3, 2)) / jnp.sqrt(jnp.float32(hd))
    if keep is not None:
        s = jnp.where(keep[:, None, :, :], s, -jnp.inf)
    p = jax.nn.softmax(s, axis=-1)
    a = (p @ v).transpose(0, 2, 1, 3).reshape(B, Sq, E)
    return a @ wo


def _ref_ln(x, g, b, eps=1e-5):
    mu = jnp.mean(x, axis=-1, keepdims=True)
    var = jnp.mean((x - mu) ** 2, axis=-1, keepdims=True)
    return (x - mu) * jax.lax.rsqrt(var + eps) * g + b


def ref_decoder_forward(params, tokens, num_heads, encoder_outputs=None,
                        self_mask=None, cross_mask=None):
    x = params["emb"][tokens].astype(jnp.float32)
    S, E = x.shape[1], x.shape[2]
    x = x + params["pe"][:S, :][None, :, :]
    for lp in params["layers"]:
        def unpack(prefix):
            wq = lp[prefix + "_wq"].astype(jnp.float32)
            wkv = lp[prefix + "_wkv"].astype(jnp.float32)
            wo = lp[prefix + "_wo"].astype(jnp.float32).reshape(E, E)
            return wq, wkv[:, :E], wkv[:, E:], wo
        wq, wk, wv, wo = unpack("sa")
        attn = _ref_mha(x, x, self_mask, wq, wk, wv, wo, num_heads)
        x = _ref_ln(attn + x, lp["ln1_g"], lp["ln1_b"])
        if encoder_outputs is not None:
            wq, wk, wv, wo = unpack("ca")
            ca = _ref_mha(x, encoder_outputs, cross_mask, wq, wk, wv, wo, num_heads)
            x = _ref_ln(ca + x, lp["ln2_g"], lp["ln2_b"])
        h = jnp.maximum(x @ lp["ff_w1"].astype(jnp.float32) + lp["ff_b1"], 0.0)
        f = h @ lp["ff_w2"].astype(jnp.float32) + lp["ff_b2"]
        x = _ref_ln(f + x, lp["ln3_g"], lp["ln3_b"])
    return x


# ----------------------------- main ------------------------------------------

if __name__ == "__main__":
    vocab_size = 50
    embedding_dim = 32
    max_sequence_length = 16
    num_heads = 4
    ff_dim = 64
    num_layers = 2
    B, S, S_enc = 2, 8, 8

    key = jax.random.PRNGKey(0)
    k_params, k_tok, k_enc = jax.random.split(key, 3)

    params = init_params(k_params, vocab_size, embedding_dim,
                         max_sequence_length, num_heads, ff_dim, num_layers)
    tokens = jax.random.randint(k_tok, (B, S), 0, vocab_size, dtype=jnp.int32)
    encoder_outputs = jax.random.normal(k_enc, (B, S_enc, embedding_dim),
                                        dtype=jnp.float32)

    # Causal self-attention mask is generated *inside* the kernel (no mask DMA).
    out = decoder_forward(params, tokens, num_heads,
                          encoder_outputs=encoder_outputs,
                          self_mask="causal", cross_mask=None)
    out = jax.block_until_ready(out)

    causal_keep = jnp.broadcast_to(jnp.tril(jnp.ones((S, S), bool)), (B, S, S))
    ref = ref_decoder_forward(params, tokens, num_heads,
                              encoder_outputs=encoder_outputs,
                              self_mask=causal_keep, cross_mask=None)
    # bf16 MXU inputs (f32 accumulation) vs the pure-f32 reference: allow a few % drift.
    np.testing.assert_allclose(np.asarray(out), np.asarray(ref), rtol=5e-2, atol=5e-2)
    assert out.shape == (B, S, embedding_dim)
    print("KERNEL_OK")
</pallas_src>

<mosaic_0001>
module attributes {stable_mosaic.version = 11 : i64} {
  func.func @_mha_ln_kernel(%arg0: i32, %arg1: i32, %arg2: memref<1x8x32xf32, #tpu.memory_space<vmem>>, %arg3: memref<1x8x32xf32, #tpu.memory_space<vmem>>, %arg4: memref<32x32xbf16, #tpu.memory_space<vmem>>, %arg5: memref<32x64xbf16, #tpu.memory_space<vmem>>, %arg6: memref<4x8x32xbf16, #tpu.memory_space<vmem>>, %arg7: memref<1x32xf32, #tpu.memory_space<vmem>>, %arg8: memref<1x32xf32, #tpu.memory_space<vmem>>, %arg9: memref<1x8x32xf32, #tpu.memory_space<vmem>>, %arg10: memref<8x32xf32, #tpu.memory_space<vmem>>) attributes {dimension_semantics = [#tpu.dimension_semantics<parallel>, #tpu.dimension_semantics<parallel>], iteration_bounds = array<i64: 2, 1>, scalar_prefetch = 0 : i64, scratch_operands = 1 : i64, tpu.core_type = #tpu.core_type<tc>, window_params = [{transform_indices = @transform_0, window_bounds = array<i64: 1, 8, 32>}, {transform_indices = @transform_1, window_bounds = array<i64: 1, 8, 32>}, {pipeline_mode = #tpu.pipeline_mode<synchronous>, transform_indices = @transform_2, window_bounds = array<i64: 32, 32>}, {pipeline_mode = #tpu.pipeline_mode<synchronous>, transform_indices = @transform_3, window_bounds = array<i64: 32, 64>}, {pipeline_mode = #tpu.pipeline_mode<synchronous>, transform_indices = @transform_4, window_bounds = array<i64: 4, 8, 32>}, {pipeline_mode = #tpu.pipeline_mode<synchronous>, transform_indices = @transform_5, window_bounds = array<i64: 1, 32>}, {pipeline_mode = #tpu.pipeline_mode<synchronous>, transform_indices = @transform_6, window_bounds = array<i64: 1, 32>}, {transform_indices = @transform_7, window_bounds = array<i64: 1, 8, 32>}]} {
    %c0 = arith.constant 0 : index
    %c0_0 = arith.constant 0 : index
    %c0_1 = arith.constant 0 : index
    %0 = vector.load %arg2[%c0, %c0_0, %c0_1] : memref<1x8x32xf32, #tpu.memory_space<vmem>>, vector<1x8x32xf32>
    %1 = vector.shape_cast %0 : vector<1x8x32xf32> to vector<8x32xf32>
    %c0_2 = arith.constant 0 : index
    %c0_3 = arith.constant 0 : index
    %c0_4 = arith.constant 0 : index
    %2 = vector.load %arg3[%c0_2, %c0_3, %c0_4] : memref<1x8x32xf32, #tpu.memory_space<vmem>>, vector<1x8x32xf32>
    %3 = vector.shape_cast %2 : vector<1x8x32xf32> to vector<8x32xf32>
    %4 = arith.truncf %1 : vector<8x32xf32> to vector<8x32xbf16>
    %c0_5 = arith.constant 0 : index
    %c0_6 = arith.constant 0 : index
    %5 = vector.load %arg4[%c0_5, %c0_6] : memref<32x32xbf16, #tpu.memory_space<vmem>>, vector<32x32xbf16>
    %cst = arith.constant dense<0.000000e+00> : vector<8x32xf32>
    %6 = tpu.matmul %4, %5, %cst {dimension_numbers = #tpu.dot_dimension_numbers<[1], [0], [0], [1], [0, 0, 1, 1], [], []>} : vector<8x32xbf16>, vector<32x32xbf16>, vector<8x32xf32> -> vector<8x32xf32>
    %7 = arith.truncf %3 : vector<8x32xf32> to vector<8x32xbf16>
    %c0_7 = arith.constant 0 : index
    %c0_8 = arith.constant 0 : index
    %8 = vector.load %arg5[%c0_7, %c0_8] : memref<32x64xbf16, #tpu.memory_space<vmem>>, vector<32x64xbf16>
    %cst_9 = arith.constant dense<0.000000e+00> : vector<8x64xf32>
    %9 = tpu.matmul %7, %8, %cst_9 {dimension_numbers = #tpu.dot_dimension_numbers<[1], [0], [0], [1], [0, 0, 1, 1], [], []>} : vector<8x32xbf16>, vector<32x64xbf16>, vector<8x64xf32> -> vector<8x64xf32>
    %10 = vector.extract_strided_slice %9 {offsets = [0, 0], sizes = [8, 32], strides = [1, 1]} : vector<8x64xf32> to vector<8x32xf32>
    %11 = vector.extract_strided_slice %9 {offsets = [0, 32], sizes = [8, 32], strides = [1, 1]} : vector<8x64xf32> to vector<8x32xf32>
    %cst_10 = arith.constant 0.353553385 : f32
    %12 = vector.broadcast %cst_10 : f32 to vector<8x32xf32>
    %13 = arith.mulf %6, %12 : vector<8x32xf32>
    %c8_i32 = arith.constant 8 : i32
    %14 = arith.muli %arg1, %c8_i32 : i32
    %15 = tpu.iota {dimensions = array<i32: 0>} : vector<8x8xi32>
    %16 = vector.broadcast %14 : i32 to vector<8x8xi32>
    %17 = arith.addi %16, %15 : vector<8x8xi32>
    %18 = tpu.iota {dimensions = array<i32: 1>} : vector<8x8xi32>
    %19 = arith.cmpi sge, %17, %18 : vector<8x8xi32>
    %cst_11 = arith.constant 0.000000e+00 : f32
    %20 = vector.broadcast %cst_11 : f32 to vector<8x32xf32>
    %c0_12 = arith.constant 0 : index
    %c0_13 = arith.constant 0 : index
    %21 = vector.load %arg10[%c0_12, %c0_13] : memref<8x32xf32, #tpu.memory_space<vmem>>, vector<8x32xf32>
    tpu.vector_store %arg10[%c0_12, %c0_13], %20 {strides = array<i32>} : memref<8x32xf32, #tpu.memory_space<vmem>>, vector<8x32xf32>,
    %22 = vector.extract_strided_slice %13 {offsets = [0, 0], sizes = [8, 8], strides = [1, 1]} : vector<8x32xf32> to vector<8x8xf32>
    %23 = vector.extract_strided_slice %10 {offsets = [0, 0], sizes = [8, 8], strides = [1, 1]} : vector<8x32xf32> to vector<8x8xf32>
    %24 = vector.extract_strided_slice %11 {offsets = [0, 0], sizes = [8, 8], strides = [1, 1]} : vector<8x32xf32> to vector<8x8xf32>
    %25 = tpu.transpose %23, [1, 0] : vector<8x8xf32> -> vector<8x8xf32>
    %cst_14 = arith.constant dense<0.000000e+00> : vector<8x8xf32>
    %26 = tpu.matmul %22, %25, %cst_14 {dimension_numbers = #tpu.dot_dimension_numbers<[1], [0], [0], [1], [0, 0, 1, 1], [], []>} : vector<8x8xf32>, vector<8x8xf32>, vector<8x8xf32> -> vector<8x8xf32>
    %cst_15 = arith.constant -1.000000e+30 : f32
    %27 = vector.broadcast %cst_15 : f32 to vector<8x8xf32>
    %28 = arith.select %19, %26, %27 : vector<8x8xi1>, vector<8x8xf32>
    %cst_16 = arith.constant dense<0xFF800000> : vector<8xf32>
    %29 = vector.multi_reduction <maximumf>, %28, %cst_16 [1] : vector<8x8xf32> to vector<8xf32>
    %30 = vector.shape_cast %29 : vector<8xf32> to vector<8x1xf32>
    %31 = vector.broadcast %30 : vector<8x1xf32> to vector<8x8xf32>
    %32 = arith.subf %28, %31 : vector<8x8xf32>
    %33 = math.exp %32 : vector<8x8xf32>
    %cst_17 = arith.constant dense<0.000000e+00> : vector<8xf32>
    %34 = vector.multi_reduction <add>, %33, %cst_17 [1] : vector<8x8xf32> to vector<8xf32>
    %35 = vector.shape_cast %34 : vector<8xf32> to vector<8x1xf32>
    %36 = tpu.reciprocal %35 {approx = true} : vector<8x1xf32> -> vector<8x1xf32>
    %37 = vector.broadcast %36 : vector<8x1xf32> to vector<8x8xf32>
    %38 = arith.mulf %33, %37 : vector<8x8xf32>
    %39 = arith.truncf %38 : vector<8x8xf32> to vector<8x8xbf16>
    %40 = arith.truncf %24 : vector<8x8xf32> to vector<8x8xbf16>
    %cst_18 = arith.constant dense<0.000000e+00> : vector<8x8xf32>
    %41 = tpu.matmul %39, %40, %cst_18 {dimension_numbers = #tpu.dot_dimension_numbers<[1], [0], [0], [1], [0, 0, 1, 1], [], []>} : vector<8x8xbf16>, vector<8x8xbf16>, vector<8x8xf32> -> vector<8x8xf32>
    %c0_19 = arith.constant 0 : index
    %c0_20 = arith.constant 0 : index
    %42 = vector.load %arg10[%c0_19, %c0_20] : memref<8x32xf32, #tpu.memory_space<vmem>>, vector<8x32xf32>
    %43 = arith.truncf %41 : vector<8x8xf32> to vector<8x8xbf16>
    %c0_21 = arith.constant 0 : index
    %c0_22 = arith.constant 0 : index
    %c0_23 = arith.constant 0 : index
    %44 = vector.load %arg6[%c0_21, %c0_22, %c0_23] : memref<4x8x32xbf16, #tpu.memory_space<vmem>>, vector<1x8x32xbf16>
    %45 = vector.shape_cast %44 : vector<1x8x32xbf16> to vector<8x32xbf16>
    %cst_24 = arith.constant dense<0.000000e+00> : vector<8x32xf32>
    %46 = tpu.matmul %43, %45, %cst_24 {dimension_numbers = #tpu.dot_dimension_numbers<[1], [0], [0], [1], [0, 0, 1, 1], [], []>} : vector<8x8xbf16>, vector<8x32xbf16>, vector<8x32xf32> -> vector<8x32xf32>
    %47 = arith.addf %42, %46 : vector<8x32xf32>
    %c0_25 = arith.constant 0 : index
    %c0_26 = arith.constant 0 : index
    %48 = vector.load %arg10[%c0_25, %c0_26] : memref<8x32xf32, #tpu.memory_space<vmem>>, vector<8x32xf32>
    tpu.vector_store %arg10[%c0_25, %c0_26], %47 {strides = array<i32>} : memref<8x32xf32, #tpu.memory_space<vmem>>, vector<8x32xf32>,
    %49 = vector.extract_strided_slice %13 {offsets = [0, 8], sizes = [8, 8], strides = [1, 1]} : vector<8x32xf32> to vector<8x8xf32>
    %50 = vector.extract_strided_slice %10 {offsets = [0, 8], sizes = [8, 8], strides = [1, 1]} : vector<8x32xf32> to vector<8x8xf32>
    %51 = vector.extract_strided_slice %11 {offsets = [0, 8], sizes = [8, 8], strides = [1, 1]} : vector<8x32xf32> to vector<8x8xf32>
    %52 = tpu.transpose %50, [1, 0] : vector<8x8xf32> -> vector<8x8xf32>
    %cst_27 = arith.constant dense<0.000000e+00> : vector<8x8xf32>
    %53 = tpu.matmul %49, %52, %cst_27 {dimension_numbers = #tpu.dot_dimension_numbers<[1], [0], [0], [1], [0, 0, 1, 1], [], []>} : vector<8x8xf32>, vector<8x8xf32>, vector<8x8xf32> -> vector<8x8xf32>
    %cst_28 = arith.constant -1.000000e+30 : f32
    %54 = vector.broadcast %cst_28 : f32 to vector<8x8xf32>
    %55 = arith.select %19, %53, %54 : vector<8x8xi1>, vector<8x8xf32>
    %cst_29 = arith.constant dense<0xFF800000> : vector<8xf32>
    %56 = vector.multi_reduction <maximumf>, %55, %cst_29 [1] : vector<8x8xf32> to vector<8xf32>
    %57 = vector.shape_cast %56 : vector<8xf32> to vector<8x1xf32>
    %58 = vector.broadcast %57 : vector<8x1xf32> to vector<8x8xf32>
    %59 = arith.subf %55, %58 : vector<8x8xf32>
    %60 = math.exp %59 : vector<8x8xf32>
    %cst_30 = arith.constant dense<0.000000e+00> : vector<8xf32>
    %61 = vector.multi_reduction <add>, %60, %cst_30 [1] : vector<8x8xf32> to vector<8xf32>
    %62 = vector.shape_cast %61 : vector<8xf32> to vector<8x1xf32>
    %63 = tpu.reciprocal %62 {approx = true} : vector<8x1xf32> -> vector<8x1xf32>
    %64 = vector.broadcast %63 : vector<8x1xf32> to vector<8x8xf32>
    %65 = arith.mulf %60, %64 : vector<8x8xf32>
    %66 = arith.truncf %65 : vector<8x8xf32> to vector<8x8xbf16>
    %67 = arith.truncf %51 : vector<8x8xf32> to vector<8x8xbf16>
    %cst_31 = arith.constant dense<0.000000e+00> : vector<8x8xf32>
    %68 = tpu.matmul %66, %67, %cst_31 {dimension_numbers = #tpu.dot_dimension_numbers<[1], [0], [0], [1], [0, 0, 1, 1], [], []>} : vector<8x8xbf16>, vector<8x8xbf16>, vector<8x8xf32> -> vector<8x8xf32>
    %c0_32 = arith.constant 0 : index
    %c0_33 = arith.constant 0 : index
    %69 = vector.load %arg10[%c0_32, %c0_33] : memref<8x32xf32, #tpu.memory_space<vmem>>, vector<8x32xf32>
    %70 = arith.truncf %68 : vector<8x8xf32> to vector<8x8xbf16>
    %c1 = arith.constant 1 : index
    %c0_34 = arith.constant 0 : index
    %c0_35 = arith.constant 0 : index
    %71 = vector.load %arg6[%c1, %c0_34, %c0_35] : memref<4x8x32xbf16, #tpu.memory_space<vmem>>, vector<1x8x32xbf16>
    %72 = vector.shape_cast %71 : vector<1x8x32xbf16> to vector<8x32xbf16>
    %cst_36 = arith.constant dense<0.000000e+00> : vector<8x32xf32>
    %73 = tpu.matmul %70, %72, %cst_36 {dimension_numbers = #tpu.dot_dimension_numbers<[1], [0], [0], [1], [0, 0, 1, 1], [], []>} : vector<8x8xbf16>, vector<8x32xbf16>, vector<8x32xf32> -> vector<8x32xf32>
    %74 = arith.addf %69, %73 : vector<8x32xf32>
    %c0_37 = arith.constant 0 : index
    %c0_38 = arith.constant 0 : index
    %75 = vector.load %arg10[%c0_37, %c0_38] : memref<8x32xf32, #tpu.memory_space<vmem>>, vector<8x32xf32>
    tpu.vector_store %arg10[%c0_37, %c0_38], %74 {strides = array<i32>} : memref<8x32xf32, #tpu.memory_space<vmem>>, vector<8x32xf32>,
    %76 = vector.extract_strided_slice %13 {offsets = [0, 16], sizes = [8, 8], strides = [1, 1]} : vector<8x32xf32> to vector<8x8xf32>
    %77 = vector.extract_strided_slice %10 {offsets = [0, 16], sizes = [8, 8], strides = [1, 1]} : vector<8x32xf32> to vector<8x8xf32>
    %78 = vector.extract_strided_slice %11 {offsets = [0, 16], sizes = [8, 8], strides = [1, 1]} : vector<8x32xf32> to vector<8x8xf32>
    %79 = tpu.transpose %77, [1, 0] : vector<8x8xf32> -> vector<8x8xf32>
    %cst_39 = arith.constant dense<0.000000e+00> : vector<8x8xf32>
    %80 = tpu.matmul %76, %79, %cst_39 {dimension_numbers = #tpu.dot_dimension_numbers<[1], [0], [0], [1], [0, 0, 1, 1], [], []>} : vector<8x8xf32>, vector<8x8xf32>, vector<8x8xf32> -> vector<8x8xf32>
    %cst_40 = arith.constant -1.000000e+30 : f32
    %81 = vector.broadcast %cst_40 : f32 to vector<8x8xf32>
    %82 = arith.select %19, %80, %81 : vector<8x8xi1>, vector<8x8xf32>
    %cst_41 = arith.constant dense<0xFF800000> : vector<8xf32>
    %83 = vector.multi_reduction <maximumf>, %82, %cst_41 [1] : vector<8x8xf32> to vector<8xf32>
    %84 = vector.shape_cast %83 : vector<8xf32> to vector<8x1xf32>
    %85 = vector.broadcast %84 : vector<8x1xf32> to vector<8x8xf32>
    %86 = arith.subf %82, %85 : vector<8x8xf32>
    %87 = math.exp %86 : vector<8x8xf32>
    %cst_42 = arith.constant dense<0.000000e+00> : vector<8xf32>
    %88 = vector.multi_reduction <add>, %87, %cst_42 [1] : vector<8x8xf32> to vector<8xf32>
    %89 = vector.shape_cast %88 : vector<8xf32> to vector<8x1xf32>
    %90 = tpu.reciprocal %89 {approx = true} : vector<8x1xf32> -> vector<8x1xf32>
    %91 = vector.broadcast %90 : vector<8x1xf32> to vector<8x8xf32>
    %92 = arith.mulf %87, %91 : vector<8x8xf32>
    %93 = arith.truncf %92 : vector<8x8xf32> to vector<8x8xbf16>
    %94 = arith.truncf %78 : vector<8x8xf32> to vector<8x8xbf16>
    %cst_43 = arith.constant dense<0.000000e+00> : vector<8x8xf32>
    %95 = tpu.matmul %93, %94, %cst_43 {dimension_numbers = #tpu.dot_dimension_numbers<[1], [0], [0], [1], [0, 0, 1, 1], [], []>} : vector<8x8xbf16>, vector<8x8xbf16>, vector<8x8xf32> -> vector<8x8xf32>
    %c0_44 = arith.constant 0 : index
    %c0_45 = arith.constant 0 : index
    %96 = vector.load %arg10[%c0_44, %c0_45] : memref<8x32xf32, #tpu.memory_space<vmem>>, vector<8x32xf32>
    %97 = arith.truncf %95 : vector<8x8xf32> to vector<8x8xbf16>
    %c2 = arith.constant 2 : index
    %c0_46 = arith.constant 0 : index
    %c0_47 = arith.constant 0 : index
    %98 = vector.load %arg6[%c2, %c0_46, %c0_47] : memref<4x8x32xbf16, #tpu.memory_space<vmem>>, vector<1x8x32xbf16>
    %99 = vector.shape_cast %98 : vector<1x8x32xbf16> to vector<8x32xbf16>
    %cst_48 = arith.constant dense<0.000000e+00> : vector<8x32xf32>
    %100 = tpu.matmul %97, %99, %cst_48 {dimension_numbers = #tpu.dot_dimension_numbers<[1], [0], [0], [1], [0, 0, 1, 1], [], []>} : vector<8x8xbf16>, vector<8x32xbf16>, vector<8x32xf32> -> vector<8x32xf32>
    %101 = arith.addf %96, %100 : vector<8x32xf32>
    %c0_49 = arith.constant 0 : index
    %c0_50 = arith.constant 0 : index
    %102 = vector.load %arg10[%c0_49, %c0_50] : memref<8x32xf32, #tpu.memory_space<vmem>>, vector<8x32xf32>
    tpu.vector_store %arg10[%c0_49, %c0_50], %101 {strides = array<i32>} : memref<8x32xf32, #tpu.memory_space<vmem>>, vector<8x32xf32>,
    %103 = vector.extract_strided_slice %13 {offsets = [0, 24], sizes = [8, 8], strides = [1, 1]} : vector<8x32xf32> to vector<8x8xf32>
    %104 = vector.extract_strided_slice %10 {offsets = [0, 24], sizes = [8, 8], strides = [1, 1]} : vector<8x32xf32> to vector<8x8xf32>
    %105 = vector.extract_strided_slice %11 {offsets = [0, 24], sizes = [8, 8], strides = [1, 1]} : vector<8x32xf32> to vector<8x8xf32>
    %106 = tpu.transpose %104, [1, 0] : vector<8x8xf32> -> vector<8x8xf32>
    %cst_51 = arith.constant dense<0.000000e+00> : vector<8x8xf32>
    %107 = tpu.matmul %103, %106, %cst_51 {dimension_numbers = #tpu.dot_dimension_numbers<[1], [0], [0], [1], [0, 0, 1, 1], [], []>} : vector<8x8xf32>, vector<8x8xf32>, vector<8x8xf32> -> vector<8x8xf32>
    %cst_52 = arith.constant -1.000000e+30 : f32
    %108 = vector.broadcast %cst_52 : f32 to vector<8x8xf32>
    %109 = arith.select %19, %107, %108 : vector<8x8xi1>, vector<8x8xf32>
    %cst_53 = arith.constant dense<0xFF800000> : vector<8xf32>
    %110 = vector.multi_reduction <maximumf>, %109, %cst_53 [1] : vector<8x8xf32> to vector<8xf32>
    %111 = vector.shape_cast %110 : vector<8xf32> to vector<8x1xf32>
    %112 = vector.broadcast %111 : vector<8x1xf32> to vector<8x8xf32>
    %113 = arith.subf %109, %112 : vector<8x8xf32>
    %114 = math.exp %113 : vector<8x8xf32>
    %cst_54 = arith.constant dense<0.000000e+00> : vector<8xf32>
    %115 = vector.multi_reduction <add>, %114, %cst_54 [1] : vector<8x8xf32> to vector<8xf32>
    %116 = vector.shape_cast %115 : vector<8xf32> to vector<8x1xf32>
    %117 = tpu.reciprocal %116 {approx = true} : vector<8x1xf32> -> vector<8x1xf32>
    %118 = vector.broadcast %117 : vector<8x1xf32> to vector<8x8xf32>
    %119 = arith.mulf %114, %118 : vector<8x8xf32>
    %120 = arith.truncf %119 : vector<8x8xf32> to vector<8x8xbf16>
    %121 = arith.truncf %105 : vector<8x8xf32> to vector<8x8xbf16>
    %cst_55 = arith.constant dense<0.000000e+00> : vector<8x8xf32>
    %122 = tpu.matmul %120, %121, %cst_55 {dimension_numbers = #tpu.dot_dimension_numbers<[1], [0], [0], [1], [0, 0, 1, 1], [], []>} : vector<8x8xbf16>, vector<8x8xbf16>, vector<8x8xf32> -> vector<8x8xf32>
    %c0_56 = arith.constant 0 : index
    %c0_57 = arith.constant 0 : index
    %123 = vector.load %arg10[%c0_56, %c0_57] : memref<8x32xf32, #tpu.memory_space<vmem>>, vector<8x32xf32>
    %124 = arith.truncf %122 : vector<8x8xf32> to vector<8x8xbf16>
    %c3 = arith.constant 3 : index
    %c0_58 = arith.constant 0 : index
    %c0_59 = arith.constant 0 : index
    %125 = vector.load %arg6[%c3, %c0_58, %c0_59] : memref<4x8x32xbf16, #tpu.memory_space<vmem>>, vector<1x8x32xbf16>
    %126 = vector.shape_cast %125 : vector<1x8x32xbf16> to vector<8x32xbf16>
    %cst_60 = arith.constant dense<0.000000e+00> : vector<8x32xf32>
    %127 = tpu.matmul %124, %126, %cst_60 {dimension_numbers = #tpu.dot_dimension_numbers<[1], [0], [0], [1], [0, 0, 1, 1], [], []>} : vector<8x8xbf16>, vector<8x32xbf16>, vector<8x32xf32> -> vector<8x32xf32>
    %128 = arith.addf %123, %127 : vector<8x32xf32>
    %c0_61 = arith.constant 0 : index
    %c0_62 = arith.constant 0 : index
    %129 = vector.load %arg10[%c0_61, %c0_62] : memref<8x32xf32, #tpu.memory_space<vmem>>, vector<8x32xf32>
    tpu.vector_store %arg10[%c0_61, %c0_62], %128 {strides = array<i32>} : memref<8x32xf32, #tpu.memory_space<vmem>>, vector<8x32xf32>,
    %c0_63 = arith.constant 0 : index
    %c0_64 = arith.constant 0 : index
    %130 = vector.load %arg10[%c0_63, %c0_64] : memref<8x32xf32, #tpu.memory_space<vmem>>, vector<8x32xf32>
    %131 = arith.addf %130, %1 : vector<8x32xf32>
    %cst_65 = arith.constant dense<0.000000e+00> : vector<8xf32>
    %132 = vector.multi_reduction <add>, %131, %cst_65 [1] : vector<8x32xf32> to vector<8xf32>
    %133 = vector.shape_cast %132 : vector<8xf32> to vector<8x1xf32>
    %cst_66 = arith.constant 3.200000e+01 : f32
    %134 = vector.broadcast %cst_66 : f32 to vector<8x1xf32>
    %135 = arith.divf %133, %134 : vector<8x1xf32>
    %136 = vector.broadcast %135 : vector<8x1xf32> to vector<8x32xf32>
    %137 = arith.subf %131, %136 : vector<8x32xf32>
    %138 = arith.mulf %137, %137 : vector<8x32xf32>
    %cst_67 = arith.constant dense<0.000000e+00> : vector<8xf32>
    %139 = vector.multi_reduction <add>, %138, %cst_67 [1] : vector<8x32xf32> to vector<8xf32>
    %140 = vector.shape_cast %139 : vector<8xf32> to vector<8x1xf32>
    %cst_68 = arith.constant 3.200000e+01 : f32
    %141 = vector.broadcast %cst_68 : f32 to vector<8x1xf32>
    %142 = arith.divf %140, %141 : vector<8x1xf32>
    %143 = vector.broadcast %135 : vector<8x1xf32> to vector<8x32xf32>
    %144 = arith.subf %131, %143 : vector<8x32xf32>
    %cst_69 = arith.constant 9.99999974E-6 : f32
    %145 = vector.broadcast %cst_69 : f32 to vector<8x1xf32>
    %146 = arith.addf %142, %145 : vector<8x1xf32>
    %147 = math.rsqrt %146 : vector<8x1xf32>
    %148 = vector.broadcast %147 : vector<8x1xf32> to vector<8x32xf32>
    %149 = arith.mulf %144, %148 : vector<8x32xf32>
    %c0_70 = arith.constant 0 : index
    %c0_71 = arith.constant 0 : index
    %150 = vector.load %arg7[%c0_70, %c0_71] : memref<1x32xf32, #tpu.memory_space<vmem>>, vector<1x32xf32>
    %151 = vector.broadcast %150 : vector<1x32xf32> to vector<8x32xf32>
    %152 = arith.mulf %149, %151 : vector<8x32xf32>
    %c0_72 = arith.constant 0 : index
    %c0_73 = arith.constant 0 : index
    %153 = vector.load %arg8[%c0_72, %c0_73] : memref<1x32xf32, #tpu.memory_space<vmem>>, vector<1x32xf32>
    %154 = vector.broadcast %153 : vector<1x32xf32> to vector<8x32xf32>
    %155 = arith.addf %152, %154 : vector<8x32xf32>
    %c0_74 = arith.constant 0 : index
    %c0_75 = arith.constant 0 : index
    %c0_76 = arith.constant 0 : index
    %156 = vector.load %arg9[%c0_74, %c0_75, %c0_76] : memref<1x8x32xf32, #tpu.memory_space<vmem>>, vector<1x8x32xf32>
    %157 = vector.shape_cast %156 : vector<1x8x32xf32> to vector<8x32xf32>
    %158 = vector.shape_cast %155 : vector<8x32xf32> to vector<1x8x32xf32>
    tpu.vector_store %arg9[%c0_74, %c0_75, %c0_76], %158 {strides = array<i32>} : memref<1x8x32xf32, #tpu.memory_space<vmem>>, vector<1x8x32xf32>,
    return
  }
  func.func @transform_0(%arg0: i32, %arg1: i32) -> (i32, i32, i32) {
    %c0_i32 = arith.constant 0 : i32
    %c0_i32_0 = arith.constant 0 : i32
    return %arg0, %arg1, %c0_i32 : i32, i32, i32
  }
  func.func @transform_1(%arg0: i32, %arg1: i32) -> (i32, i32, i32) {
    %c0_i32 = arith.constant 0 : i32
    %c0_i32_0 = arith.constant 0 : i32
    %c0_i32_1 = arith.constant 0 : i32
    return %arg0, %c0_i32, %c0_i32_0 : i32, i32, i32
  }
  func.func @transform_2(%arg0: i32, %arg1: i32) -> (i32, i32) {
    %c0_i32 = arith.constant 0 : i32
    %c0_i32_0 = arith.constant 0 : i32
    %c0_i32_1 = arith.constant 0 : i32
    return %c0_i32, %c0_i32_0 : i32, i32
  }
  func.func @transform_3(%arg0: i32, %arg1: i32) -> (i32, i32) {
    %c0_i32 = arith.constant 0 : i32
    %c0_i32_0 = arith.constant 0 : i32
    %c0_i32_1 = arith.constant 0 : i32
    return %c0_i32, %c0_i32_0 : i32, i32
  }
  func.func @transform_4(%arg0: i32, %arg1: i32) -> (i32, i32, i32) {
    %c0_i32 = arith.constant 0 : i32
    %c0_i32_0 = arith.constant 0 : i32
    %c0_i32_1 = arith.constant 0 : i32
    %c0_i32_2 = arith.constant 0 : i32
    return %c0_i32, %c0_i32_0, %c0_i32_1 : i32, i32, i32
  }
  func.func @transform_5(%arg0: i32, %arg1: i32) -> (i32, i32) {
    %c0_i32 = arith.constant 0 : i32
    %c0_i32_0 = arith.constant 0 : i32
    %c0_i32_1 = arith.constant 0 : i32
    return %c0_i32, %c0_i32_0 : i32, i32
  }
  func.func @transform_6(%arg0: i32, %arg1: i32) -> (i32, i32) {
    %c0_i32 = arith.constant 0 : i32
    %c0_i32_0 = arith.constant 0 : i32
    %c0_i32_1 = arith.constant 0 : i32
    return %c0_i32, %c0_i32_0 : i32, i32
  }
  func.func @transform_7(%arg0: i32, %arg1: i32) -> (i32, i32, i32) {
    %c0_i32 = arith.constant 0 : i32
    %c0_i32_0 = arith.constant 0 : i32
    return %arg0, %arg1, %c0_i32 : i32, i32, i32
  }
}

</mosaic_0001>

<llo_original>
// kernel: tpu_custom_call.1
$region0: #{tpu_custom_call.1}
  #allocation0 [shape = 'u32[]', space=smem, size = 0x4, offset = 0x4, fixed_abs, tag = 'smem constant byte address 0x4 - core index']
  #allocation1 [shape = 'u32[144,128]{1,0:T(1,128)}', space=vmem, size = 0x12000, scoped, tag = 'internal scratch']
  #allocation2 [shape = 'f32[8,32]{1,0:T(8,128)}', space=vmem, size = 0x1000, scoped, tag = 'scratch operand']
  %s0 = inlined_call_operand.hbm [shape: f32[2,8,32], index: 0, kind: input, shape index: {}]
  %s1 = inlined_call_operand.hbm [shape: f32[2,8,32], index: 1, kind: input, shape index: {}]
  %s2 = inlined_call_operand.hbm [shape: bf16[32,32], index: 2, kind: input, shape index: {}]
  %s3 = inlined_call_operand.hbm [shape: bf16[32,64], index: 3, kind: input, shape index: {}]
  %s4 = inlined_call_operand.hbm [shape: bf16[4,8,32], index: 4, kind: input, shape index: {}]
  %s5 = inlined_call_operand.hbm [shape: f32[1,32], index: 5, kind: input, shape index: {}]
  %s6 = inlined_call_operand.hbm [shape: f32[1,32], index: 6, kind: input, shape index: {}]
  %s7 = inlined_call_operand.hbm [shape: f32[2,8,32], index: 7, kind: output, shape index: {}]
  %s8 = sld [smem:[#allocation0]]
  $region89: #{tpu_custom_call.1} parent=0
    _
  %s10 = ssub.s32 1, %s8
  %s11 = scalar_select 0, %s10, %s8
  $region1: #{tpu_custom_call.1} parent=0
    #allocation3 [shape = 'u8[8192]{0}', space=vmem, size = 0x2000, scoped, tag = 'input window, operand 0']
    #allocation4 [shape = 's32[2]{0}', space=sflag, size = 0x8, scoped, tag = 'scoped memory for tpu_custom_call.1']
    #allocation5 [shape = 's32[2]{0}', space=sflag, size = 0x8, scoped, tag = 'scoped memory for tpu_custom_call.1']
    #allocation6 [shape = 'u8[8192]{0}', space=vmem, size = 0x2000, scoped, tag = 'input window, operand 1']
    #allocation7 [shape = 's32[2]{0}', space=sflag, size = 0x8, scoped, tag = 'scoped memory for tpu_custom_call.1']
    #allocation8 [shape = 'u8[8192]{0}', space=vmem, size = 0x2000, scoped, tag = 'input window, operand 2, single buffered']
    #allocation9 [shape = 'u8[8192]{0}', space=vmem, size = 0x2000, scoped, tag = 'input window, operand 3, single buffered']
    #allocation10 [shape = 's32[1]{0}', space=sflag, size = 0x4, scoped, tag = 'scoped memory for tpu_custom_call.1']
    #allocation11 [shape = 'u8[8192]{0}', space=vmem, size = 0x2000, scoped, tag = 'input window, operand 4, single buffered']
    #allocation12 [shape = 'u8[512]{0}', space=vmem, size = 0x400, scoped, tag = 'input window, operand 5, single buffered']
    #allocation13 [shape = 's32[1]{0}', space=sflag, size = 0x4, scoped, tag = 'scoped memory for tpu_custom_call.1']
    #allocation14 [shape = 'u8[512]{0}', space=vmem, size = 0x400, scoped, tag = 'input window, operand 6, single buffered']
    #allocation15 [shape = 'u8[8192]{0}', space=vmem, size = 0x2000, scoped, tag = 'output window, operand 0']
    %12 = vsyncpa [#allocation4], 0
    %s13 = scalar_lea.sflag [#allocation4], 1
    %14 = vsyncpa %s13, 0
    %15 = vsyncpa [#allocation7], 0
    %s16 = scalar_lea.sflag [#allocation7], 1
    %17 = vsyncpa %s16, 0
    %18 = vsyncpa [#allocation10], 0
    %19 = vsyncpa [#allocation13], 0
    %20 = vsyncpa [#allocation5], 0
    %s21 = scalar_lea.sflag [#allocation5], 1
    %22 = vsyncpa %s21, 0
    loop: start=0, step=1, limit=4
    $region2: #{tpu_custom_call.1} parent=1 // loop_pre_header
      _
    $region3: #{tpu_custom_call.1} parent=1 // loop_header
      %s24 = sphi 0, %s28
      %p25 = scmp.ge.s32.totalorder %s24, 4
      %s31 = sphi 0, %s43
      %s32 = sphi 0, %s39
      %s33 = sphi 0, %s31
      %s34 = sphi 0, %s32
      %s35 = sphi 0, %s33
      %s36 = sphi 0, %s34
      %s48 = sphi 0, %s50
      %s51 = sphi 0, %s48
      %s52 = sphi 0, %s51
      %s68 = sphi 0, %s52
      %s74 = sphi 0, %s76
      %s77 = sphi 0, %s74
      %s78 = sphi 0, %s77
      %s94 = sphi 0, %s78
      %s98 = sphi 0, %s98
      %s100 = sphi 0, %s98
      %s101 = sphi 0, %s100
      %s115 = sphi 0, %s101
      %s119 = sphi 0, %s119
      %s121 = sphi 0, %s119
      %s122 = sphi 0, %s121
      %s136 = sphi 0, %s122
      %s140 = sphi 0, %s140
      %s142 = sphi 0, %s140
      %s143 = sphi 0, %s142
      %s157 = sphi 0, %s143
      %s161 = sphi 0, %s161
      %s163 = sphi 0, %s161
      %s164 = sphi 0, %s163
      %s178 = sphi 0, %s164
      %s182 = sphi 0, %s182
      %s184 = sphi 0, %s182
      %s185 = sphi 0, %s184
      %s199 = sphi 0, %s185
      %s207 = sphi 0, %s209
      %s210 = sphi 0, %s207
      %s211 = sphi 0, %s210
      %s227 = sphi 0, %s211
    $region4: #{tpu_custom_call.1} parent=1 // loop_header_branch
      %27 = sbr.rel (%p25) target = $region8
    $region5: #{tpu_custom_call.1} parent=1 // loop_body
      %s29 = ssub.s32 %s24, 1
      %s30 = ssub.s32 %s24, 2
      %s37 = sadd.s32 1, %s32
      %p38 = scmp.ge.s32.totalorder %s37, 1
      %s39 = scalar_select %p38, 0, %s37
      %s40 = sadd.s32 1, %s31
      %s41 = scalar_select %p38, %s40, %s31
      %p42 = scmp.ge.s32.totalorder %s41, 2
      %s43 = scalar_select %p42, 0, %s41
      %s44 = ssub.s32 %s31, %s43
      %s45 = ssub.s32 %s32, %s39
      %s46 = sor.u32 %s44, %s45
      %p47 = scmp.eq.s32.totalorder %s46, 0
      %s49 = sadd.s32 %s48, 1
      %s50 = scalar_select %p47, %s48, %s49
      %p53 = pneg %p47
      %p54 = scmp.eq.s32.totalorder %s24, 1
      %p55 = por %p53, %p54
      %p56 = scmp.ne.s32.totalorder %s48, %s51
      %p57 = scmp.eq.s32.totalorder %s24, 0
      %p58 = por %p56, %p57
      %p59 = scmp.ne.s32.totalorder %s48, %s51
      %p60 = scmp.eq.s32.totalorder %s29, 1
      %p61 = por %p59, %p60
      %p62 = scmp.ne.s32.totalorder %s51, %s52
      %p63 = scmp.eq.s32.totalorder %s29, 0
      %p64 = por %p62, %p63
      %p65 = scmp.ne.s32.totalorder %s51, %s52
      %p66 = scmp.eq.s32.totalorder %s30, 1
      %p67 = por %p65, %p66
      %p69 = scmp.ne.s32.totalorder %s52, %s68
      %p70 = scmp.eq.s32.totalorder %s30, 0
      %p71 = por %p69, %p70
      %s72 = ssub.s32 %s31, %s43
      %p73 = scmp.eq.s32.totalorder %s72, 0
      %s75 = sadd.s32 %s74, 1
      %s76 = scalar_select %p73, %s74, %s75
      %p79 = pneg %p73
      %p80 = scmp.eq.s32.totalorder %s24, 1
      %p81 = por %p79, %p80
      %p82 = scmp.ne.s32.totalorder %s74, %s77
      %p83 = scmp.eq.s32.totalorder %s24, 0
      %p84 = por %p82, %p83
      %p85 = scmp.ne.s32.totalorder %s74, %s77
      %p86 = scmp.eq.s32.totalorder %s29, 1
      %p87 = por %p85, %p86
      %p88 = scmp.ne.s32.totalorder %s77, %s78
      %p89 = scmp.eq.s32.totalorder %s29, 0
      %p90 = por %p88, %p89
      %p91 = scmp.ne.s32.totalorder %s77, %s78
      %p92 = scmp.eq.s32.totalorder %s30, 1
      %p93 = por %p91, %p92
      %p95 = scmp.ne.s32.totalorder %s78, %s94
      %p96 = scmp.eq.s32.totalorder %s30, 0
      %p97 = por %p95, %p96
      %s99 = sadd.s32 %s98, 1
      %p102 = scmp.eq.s32.totalorder %s24, 1
      %p103 = scmp.ne.s32.totalorder %s98, %s100
      %p104 = scmp.eq.s32.totalorder %s24, 0
      %p105 = por %p103, %p104
      %p106 = scmp.ne.s32.totalorder %s98, %s100
      %p107 = scmp.eq.s32.totalorder %s29, 1
      %p108 = por %p106, %p107
      %p109 = scmp.ne.s32.totalorder %s100, %s101
      %p110 = scmp.eq.s32.totalorder %s29, 0
      %p111 = por %p109, %p110
      %p112 = scmp.ne.s32.totalorder %s100, %s101
      %p113 = scmp.eq.s32.totalorder %s30, 1
      %p114 = por %p112, %p113
      %p116 = scmp.ne.s32.totalorder %s101, %s115
      %p117 = scmp.eq.s32.totalorder %s30, 0
      %p118 = por %p116, %p117
      %s120 = sadd.s32 %s119, 1
      %p123 = scmp.eq.s32.totalorder %s24, 1
      %p124 = scmp.ne.s32.totalorder %s119, %s121
      %p125 = scmp.eq.s32.totalorder %s24, 0
      %p126 = por %p124, %p125
      %p127 = scmp.ne.s32.totalorder %s119, %s121
      %p128 = scmp.eq.s32.totalorder %s29, 1
      %p129 = por %p127, %p128
      %p130 = scmp.ne.s32.totalorder %s121, %s122
      %p131 = scmp.eq.s32.totalorder %s29, 0
      %p132 = por %p130, %p131
      %p133 = scmp.ne.s32.totalorder %s121, %s122
      %p134 = scmp.eq.s32.totalorder %s30, 1
      %p135 = por %p133, %p134
      %p137 = scmp.ne.s32.totalorder %s122, %s136
      %p138 = scmp.eq.s32.totalorder %s30, 0
      %p139 = por %p137, %p138
      %s141 = sadd.s32 %s140, 1
      %p144 = scmp.eq.s32.totalorder %s24, 1
      %p145 = scmp.ne.s32.totalorder %s140, %s142
      %p146 = scmp.eq.s32.totalorder %s24, 0
      %p147 = por %p145, %p146
      %p148 = scmp.ne.s32.totalorder %s140, %s142
      %p149 = scmp.eq.s32.totalorder %s29, 1
      %p150 = por %p148, %p149
      %p151 = scmp.ne.s32.totalorder %s142, %s143
      %p152 = scmp.eq.s32.totalorder %s29, 0
      %p153 = por %p151, %p152
      %p154 = scmp.ne.s32.totalorder %s142, %s143
      %p155 = scmp.eq.s32.totalorder %s30, 1
      %p156 = por %p154, %p155
      %p158 = scmp.ne.s32.totalorder %s143, %s157
      %p159 = scmp.eq.s32.totalorder %s30, 0
      %p160 = por %p158, %p159
      %s162 = sadd.s32 %s161, 1
      %p165 = scmp.eq.s32.totalorder %s24, 1
      %p166 = scmp.ne.s32.totalorder %s161, %s163
      %p167 = scmp.eq.s32.totalorder %s24, 0
      %p168 = por %p166, %p167
      %p169 = scmp.ne.s32.totalorder %s161, %s163
      %p170 = scmp.eq.s32.totalorder %s29, 1
      %p171 = por %p169, %p170
      %p172 = scmp.ne.s32.totalorder %s163, %s164
      %p173 = scmp.eq.s32.totalorder %s29, 0
      %p174 = por %p172, %p173
      %p175 = scmp.ne.s32.totalorder %s163, %s164
      %p176 = scmp.eq.s32.totalorder %s30, 1
      %p177 = por %p175, %p176
      %p179 = scmp.ne.s32.totalorder %s164, %s178
      %p180 = scmp.eq.s32.totalorder %s30, 0
      %p181 = por %p179, %p180
      %s183 = sadd.s32 %s182, 1
      %p186 = scmp.eq.s32.totalorder %s24, 1
      %p187 = scmp.ne.s32.totalorder %s182, %s184
      %p188 = scmp.eq.s32.totalorder %s24, 0
      %p189 = por %p187, %p188
      %p190 = scmp.ne.s32.totalorder %s182, %s184
      %p191 = scmp.eq.s32.totalorder %s29, 1
      %p192 = por %p190, %p191
      %p193 = scmp.ne.s32.totalorder %s184, %s185
      %p194 = scmp.eq.s32.totalorder %s29, 0
      %p195 = por %p193, %p194
      %p196 = scmp.ne.s32.totalorder %s184, %s185
      %p197 = scmp.eq.s32.totalorder %s30, 1
      %p198 = por %p196, %p197
      %p200 = scmp.ne.s32.totalorder %s185, %s199
      %p201 = scmp.eq.s32.totalorder %s30, 0
      %p202 = por %p200, %p201
      %s203 = ssub.s32 %s31, %s43
      %s204 = ssub.s32 %s32, %s39
      %s205 = sor.u32 %s203, %s204
      %p206 = scmp.eq.s32.totalorder %s205, 0
      %s208 = sadd.s32 %s207, 1
      %s209 = scalar_select %p206, %s207, %s208
      %p212 = pneg %p206
      %p213 = scmp.eq.s32.totalorder %s24, 1
      %p214 = por %p212, %p213
      %p215 = scmp.ne.s32.totalorder %s207, %s210
      %p216 = scmp.eq.s32.totalorder %s24, 0
      %p217 = por %p215, %p216
      %p218 = scmp.ne.s32.totalorder %s207, %s210
      %p219 = scmp.eq.s32.totalorder %s29, 1
      %p220 = por %p218, %p219
      %p221 = scmp.ne.s32.totalorder %s210, %s211
      %p222 = scmp.eq.s32.totalorder %s29, 0
      %p223 = por %p221, %p222
      %p224 = scmp.ne.s32.totalorder %s210, %s211
      %p225 = scmp.eq.s32.totalorder %s30, 1
      %p226 = por %p224, %p225
      %p228 = scmp.ne.s32.totalorder %s211, %s227
      %p229 = scmp.eq.s32.totalorder %s30, 0
      %p230 = por %p228, %p229
      %p231 = scmp.le.s32.totalorder 1, %s24
      %p232 = scmp.lt.s32.totalorder %s24, 3
      %p233 = pnand %p231, %p232
      %p234 = pneg %p233
      // Predicated region
      $region9: #{tpu_custom_call.1} parent=5 // pred_check
        _
      $region10: #{tpu_custom_call.1} parent=5 // pred_check_branch
        %236 = sbr.rel (%p233) target = $region12
      $region11: #{tpu_custom_call.1} parent=5 // pred_region
        %s237 = ssub.s32 %s24, 1
        // Predicated region
        $region13: #{tpu_custom_call.1} parent=11 // pred_check
          %p238 = pneg %p111
        $region14: #{tpu_custom_call.1} parent=11 // pred_check_branch
          %240 = sbr.rel (%p238) target = $region16
        $region15: #{tpu_custom_call.1} parent=11 // pred_region
          %s242 = ssub.s32 256, 256
          %243 = vsyncadd [#allocation7], %s242
          %s244 = sshll.u32 [#allocation8], 4
          %s245 = int_to_ptr.vmem [resolvable:$true] %s244
          %250 = dma.hbm_to_vmem [thread:$0]  %s2, 256, %s245, [#allocation7], 64, 64, 4
        $region16: #{tpu_custom_call.1} parent=11 // pred_fallthru
          _
        // Predicated region
        $region17: #{tpu_custom_call.1} parent=11 // pred_check
          %p251 = pneg %p132
        $region18: #{tpu_custom_call.1} parent=11 // pred_check_branch
          %253 = sbr.rel (%p251) target = $region20
        $region19: #{tpu_custom_call.1} parent=11 // pred_region
          %s255 = ssub.s32 256, 256
          %256 = vsyncadd [#allocation10], %s255
          %s257 = sshll.u32 [#allocation9], 4
          %s258 = int_to_ptr.vmem [resolvable:$true] %s257
          %263 = dma.hbm_to_vmem [thread:$0]  %s3, 256, %s258, [#allocation10], 64, 64, 4
        $region20: #{tpu_custom_call.1} parent=11 // pred_fallthru
          _
        // Predicated region
        $region21: #{tpu_custom_call.1} parent=11 // pred_check
          %p264 = pneg %p153
        $region22: #{tpu_custom_call.1} parent=11 // pred_check_branch
          %266 = sbr.rel (%p264) target = $region24
        $region23: #{tpu_custom_call.1} parent=11 // pred_region
          %s268 = ssub.s32 256, 256
          %269 = vsyncadd [#allocation10], %s268
          %s270 = sshll.u32 [#allocation11], 4
          %s271 = int_to_ptr.vmem [resolvable:$true] %s270
          %276 = dma.hbm_to_vmem [thread:$0]  %s4, 256, %s271, [#allocation10], 64, 64, 4
        $region24: #{tpu_custom_call.1} parent=11 // pred_fallthru
          _
        // Predicated region
        $region25: #{tpu_custom_call.1} parent=11 // pred_check
          %p277 = pneg %p174
        $region26: #{tpu_custom_call.1} parent=11 // pred_check_branch
          %279 = sbr.rel (%p277) target = $region28
        $region27: #{tpu_custom_call.1} parent=11 // pred_region
          %s281 = ssub.s32 16, 16
          %282 = vsyncadd [#allocation13], %s281
          %s284 = sshll.u32 [#allocation12], 4
          %s285 = int_to_ptr.vmem [resolvable:$true] %s284
          %287 = dma.hbm_to_vmem [thread:$0]  %s5, 16, %s285, [#allocation13]
        $region28: #{tpu_custom_call.1} parent=11 // pred_fallthru
          _
        // Predicated region
        $region29: #{tpu_custom_call.1} parent=11 // pred_check
          %p288 = pneg %p195
        $region30: #{tpu_custom_call.1} parent=11 // pred_check_branch
          %290 = sbr.rel (%p288) target = $region32
        $region31: #{tpu_custom_call.1} parent=11 // pred_region
          %s292 = ssub.s32 16, 16
          %293 = vsyncadd [#allocation13], %s292
          %s295 = sshll.u32 [#allocation14], 4
          %s296 = int_to_ptr.vmem [resolvable:$true] %s295
          %298 = dma.hbm_to_vmem [thread:$0]  %s6, 16, %s296, [#allocation13]
        $region32: #{tpu_custom_call.1} parent=11 // pred_fallthru
          _
      $region12: #{tpu_custom_call.1} parent=5 // pred_fallthru
        _
      %p299 = scmp.lt.s32.totalorder %s24, 2
      // Predicated region
      $region33: #{tpu_custom_call.1} parent=5 // pred_check
        %p300 = pneg %p299
      $region34: #{tpu_custom_call.1} parent=5 // pred_check_branch
        %302 = sbr.rel (%p300) target = $region36
      $region35: #{tpu_custom_call.1} parent=5 // pred_region
        // Predicated region
        $region37: #{tpu_custom_call.1} parent=35 // pred_check
          %p303 = pneg %p58
        $region38: #{tpu_custom_call.1} parent=35 // pred_check_branch
          %305 = sbr.rel (%p303) target = $region40
        $region39: #{tpu_custom_call.1} parent=35 // pred_region
          %s306 = sand.u32 %s48, 1
          %s307 = scalar_lea.sflag [#allocation4], %s306
          %s308 = sand.u32 %s48, 1
          %s309 = smul.addr %s308, 8
          %s310 = scalar_lea.vmem [#allocation3], %s309
          %s312 = ssub.s32 128, 128
          %313 = vsyncadd %s307, %s312
          %s314 = sadd.s32 %s32, %s31
          %s315 = smul.addr %s314, 128
          %s316 = scalar_lea.hbm %s0, %s315
          %s318 = sshll.u32 %s310, 4
          %s319 = int_to_ptr.vmem [resolvable:$true] %s318
          %321 = dma.hbm_to_vmem [thread:$0]  %s316, 128, %s319, %s307
        $region40: #{tpu_custom_call.1} parent=35 // pred_fallthru
          _
        // Predicated region
        $region41: #{tpu_custom_call.1} parent=35 // pred_check
          %p322 = pneg %p84
        $region42: #{tpu_custom_call.1} parent=35 // pred_check_branch
          %324 = sbr.rel (%p322) target = $region44
        $region43: #{tpu_custom_call.1} parent=35 // pred_region
          %s325 = sand.u32 %s24, 1
          %s326 = scalar_lea.sflag [#allocation7], %s325
          %s327 = sand.u32 %s74, 1
          %s328 = smul.addr %s327, 8
          %s329 = scalar_lea.vmem [#allocation6], %s328
          %s331 = ssub.s32 128, 128
          %332 = vsyncadd %s326, %s331
          %s333 = smul.addr %s31, 128
          %s334 = scalar_lea.hbm %s1, %s333
          %s336 = sshll.u32 %s329, 4
          %s337 = int_to_ptr.vmem [resolvable:$true] %s336
          %339 = dma.hbm_to_vmem [thread:$0]  %s334, 128, %s337, %s326
        $region44: #{tpu_custom_call.1} parent=35 // pred_fallthru
          _
      $region36: #{tpu_custom_call.1} parent=5 // pred_fallthru
        _
      %p340 = scmp.le.s32.totalorder 1, %s24
      %p341 = scmp.lt.s32.totalorder %s24, 3
      %p342 = pnand %p340, %p341
      %p343 = pneg %p342
      // Predicated region
      $region45: #{tpu_custom_call.1} parent=5 // pred_check
        _
      $region46: #{tpu_custom_call.1} parent=5 // pred_check_branch
        %345 = sbr.rel (%p342) target = $region48
      $region47: #{tpu_custom_call.1} parent=5 // pred_region
        %s346 = ssub.s32 %s24, 1
        %s347 = sand.u32 %s51, 1
        %s348 = scalar_lea.sflag [#allocation4], %s347
        %s349 = sand.u32 %s51, 1
        %s350 = smul.addr %s349, 8
        %s351 = scalar_lea.vmem [#allocation3], %s350
        // Predicated region
        $region49: #{tpu_custom_call.1} parent=47 // pred_check
          %p352 = pneg %p64
        $region50: #{tpu_custom_call.1} parent=47 // pred_check_branch
          %354 = sbr.rel (%p352) target = $region52
        $region51: #{tpu_custom_call.1} parent=47 // pred_region
          %355 = dma.done %s348, 128
        $region52: #{tpu_custom_call.1} parent=47 // pred_fallthru
          _
        %s356 = sand.u32 %s29, 1
        %s357 = scalar_lea.sflag [#allocation7], %s356
        %s358 = sand.u32 %s77, 1
        %s359 = smul.addr %s358, 8
        %s360 = scalar_lea.vmem [#allocation6], %s359
        // Predicated region
        $region53: #{tpu_custom_call.1} parent=47 // pred_check
          %p361 = pneg %p90
        $region54: #{tpu_custom_call.1} parent=47 // pred_check_branch
          %363 = sbr.rel (%p361) target = $region56
        $region55: #{tpu_custom_call.1} parent=47 // pred_region
          %364 = dma.done %s357, 128
        $region56: #{tpu_custom_call.1} parent=47 // pred_fallthru
          _
        // Predicated region
        $region57: #{tpu_custom_call.1} parent=47 // pred_check
          %p365 = pneg %p111
        $region58: #{tpu_custom_call.1} parent=47 // pred_check_branch
          %367 = sbr.rel (%p365) target = $region60
        $region59: #{tpu_custom_call.1} parent=47 // pred_region
          %368 = dma.done [#allocation7], 256
        $region60: #{tpu_custom_call.1} parent=47 // pred_fallthru
          _
        // Predicated region
        $region61: #{tpu_custom_call.1} parent=47 // pred_check
          %p369 = pneg %p132
        $region62: #{tpu_custom_call.1} parent=47 // pred_check_branch
          %371 = sbr.rel (%p369) target = $region64
        $region63: #{tpu_custom_call.1} parent=47 // pred_region
          %372 = dma.done [#allocation10], 256
        $region64: #{tpu_custom_call.1} parent=47 // pred_fallthru
          _
        // Predicated region
        $region65: #{tpu_custom_call.1} parent=47 // pred_check
          %p373 = pneg %p153
        $region66: #{tpu_custom_call.1} parent=47 // pred_check_branch
          %375 = sbr.rel (%p373) target = $region68
        $region67: #{tpu_custom_call.1} parent=47 // pred_region
          %376 = dma.done [#allocation10], 256
        $region68: #{tpu_custom_call.1} parent=47 // pred_fallthru
          _
        // Predicated region
        $region69: #{tpu_custom_call.1} parent=47 // pred_check
          %p377 = pneg %p174
        $region70: #{tpu_custom_call.1} parent=47 // pred_check_branch
          %379 = sbr.rel (%p377) target = $region72
        $region71: #{tpu_custom_call.1} parent=47 // pred_region
          %380 = dma.done [#allocation13], 16
        $region72: #{tpu_custom_call.1} parent=47 // pred_fallthru
          _
        // Predicated region
        $region73: #{tpu_custom_call.1} parent=47 // pred_check
          %p381 = pneg %p195
        $region74: #{tpu_custom_call.1} parent=47 // pred_check_branch
          %383 = sbr.rel (%p381) target = $region76
        $region75: #{tpu_custom_call.1} parent=47 // pred_region
          %384 = dma.done [#allocation13], 16
        $region76: #{tpu_custom_call.1} parent=47 // pred_fallthru
          _
        %s385 = sand.u32 %s51, 1
        %s386 = scalar_lea.sflag [#allocation4], %s385
        %s387 = sand.u32 %s51, 1
        %s388 = smul.addr %s387, 8
        %s389 = scalar_lea.vmem [#allocation3], %s388
        %p390 = pneg %p64
        %p391 = pneg %p61
        %s392 = sand.u32 %s29, 1
        %s393 = scalar_lea.sflag [#allocation7], %s392
        %s394 = sand.u32 %s77, 1
        %s395 = smul.addr %s394, 8
        %s396 = scalar_lea.vmem [#allocation6], %s395
        %p397 = pneg %p90
        %p398 = pneg %p87
        %p399 = pneg %p111
        %p400 = pneg %p108
        %p401 = pneg %p132
        %p402 = pneg %p129
        %p403 = pneg %p153
        %p404 = pneg %p150
        %p405 = pneg %p174
        %p406 = pneg %p171
        %p407 = pneg %p195
        %p408 = pneg %p192
        %p409 = pneg %p223
        %p410 = pneg %p220
        %s411 = sand.u32 %s210, 1
        %s412 = scalar_lea.sflag [#allocation5], %s411
        %s413 = sand.u32 %s210, 1
        %s414 = smul.addr %s413, 8
        %s415 = scalar_lea.vmem [#allocation15], %s414
        %v417 = vld [vmem:[%s351] sm:$0xff]
        %v418 = vld [vmem:[%s360] sm:$0xff]
        %v419 = vpack.c.bf16 %v417, %v417
        %v420 = vld [vmem:[#allocation8] sm:$0xf]
        %v421 = vld [vmem:[#allocation8 + $0x4] sm:$0xf]
        %v422 = vld [vmem:[#allocation8 + $0x8] sm:$0xf]
        %v423 = vld [vmem:[#allocation8 + $0xc] sm:$0xf]
        %v428 = vunpack.c.l.b16 %v420
        %v429 = vunpack.c.l.b16 %v421
        %v430 = vunpack.c.l.b16 %v422
        %v431 = vunpack.c.l.b16 %v423
        %v432 = vpack.c.b16 %v429, %v428
        %v433 = vpack.c.b16 %v431, %v430
        %vm436 = vcmask 261120
        %v438 = vsel %vm436, %v419, 0
        %440 = vmatprep.subr.bf16.mxu0 0
        %441 = vmatpush1.bf16.msra.mxu0 %v432
        %442 = vmatprep.subr.bf16.mxu0 0
        %443 = vmatpush1.bf16.msra.mxu0 %v433
        %444 = vmatprep.subr.bf16.mxu0 0
        %445 = vmatpush1.bf16.msra.mxu0 0
        %446 = vmatprep.subr.bf16.mxu0 0
        %447 = vmatpush1.bf16.msra.mxu0 0
        %448 = vmatprep.subr.bf16.mxu0 0
        %449 = vmatpush1.bf16.msra.mxu0 0
        %450 = vmatprep.subr.bf16.mxu0 0
        %451 = vmatpush1.bf16.msra.mxu0 0
        %452 = vmatprep.subr.bf16.mxu0 0
        %453 = vmatpush1.bf16.msra.mxu0 0
        %454 = vmatprep.subr.bf16.mxu0 0
        %455 = vmatpush1.bf16.msra.mxu0 0
        %456 = vmatprep.subr.bf16.mxu0 0
        %457 = vmatpush1.bf16.msra.mxu0 0
        %458 = vmatprep.subr.bf16.mxu0 0
        %459 = vmatpush1.bf16.msra.mxu0 0
        %460 = vmatprep.subr.bf16.mxu0 0
        %461 = vmatpush1.bf16.msra.mxu0 0
        %462 = vmatprep.subr.bf16.mxu0 0
        %463 = vmatpush1.bf16.msra.mxu0 0
        %464 = vmatprep.subr.bf16.mxu0 0
        %465 = vmatpush1.bf16.msra.mxu0 0
        %466 = vmatprep.subr.bf16.mxu0 0
        %467 = vmatpush1.bf16.msra.mxu0 0
        %468 = vmatprep.subr.bf16.mxu0 0
        %469 = vmatpush1.bf16.msra.mxu0 0
        %470 = vmatprep.subr.bf16.mxu0 0
        %471 = vmatpush1.bf16.msra.mxu0 0
        %472 = vmatprep.mubr.bf16.mxu0 0
        %473 = vmatmul.mubr.bf16.gmra.mrb[0].mxu0 %v438
        %v474 = vpop.f32.mrb[0].mxu0
        %v475 = vadd.f32 0.0, %v474
        %v476 = vpop.f32.mrb[0].mxu0
        %v477 = vpop.f32.mrb[0].mxu0
        %v478 = vpop.f32.mrb[0].mxu0
        %479 = vdwg.mxu0
        %v480 = vpack.c.bf16 %v418, %v418
        %v481 = vld [vmem:[#allocation9] sm:$0xf]
        %v482 = vld [vmem:[#allocation9 + $0x4] sm:$0xf]
        %v483 = vld [vmem:[#allocation9 + $0x8] sm:$0xf]
        %v484 = vld [vmem:[#allocation9 + $0xc] sm:$0xf]
        %v489 = vunpack.c.l.b16 %v481
        %v490 = vunpack.c.l.b16 %v482
        %v491 = vunpack.c.l.b16 %v483
        %v492 = vunpack.c.l.b16 %v484
        %v493 = vpack.c.b16 %v490, %v489
        %v494 = vpack.c.b16 %v492, %v491
        %v498 = vsel %vm436, %v480, 0
        %500 = vmatprep.subr.bf16.mxu0 0
        %501 = vmatpush1.bf16.msra.mxu0 %v493
        %502 = vmatprep.subr.bf16.mxu0 0
        %503 = vmatpush1.bf16.msra.mxu0 %v494
        %504 = vmatprep.subr.bf16.mxu0 0
        %505 = vmatpush1.bf16.msra.mxu0 0
        %506 = vmatprep.subr.bf16.mxu0 0
        %507 = vmatpush1.bf16.msra.mxu0 0
        %508 = vmatprep.subr.bf16.mxu0 0
        %509 = vmatpush1.bf16.msra.mxu0 0
        %510 = vmatprep.subr.bf16.mxu0 0
        %511 = vmatpush1.bf16.msra.mxu0 0
        %512 = vmatprep.subr.bf16.mxu0 0
        %513 = vmatpush1.bf16.msra.mxu0 0
        %514 = vmatprep.subr.bf16.mxu0 0
        %515 = vmatpush1.bf16.msra.mxu0 0
        %516 = vmatprep.subr.bf16.mxu0 0
        %517 = vmatpush1.bf16.msra.mxu0 0
        %518 = vmatprep.subr.bf16.mxu0 0
        %519 = vmatpush1.bf16.msra.mxu0 0
        %520 = vmatprep.subr.bf16.mxu0 0
        %521 = vmatpush1.bf16.msra.mxu0 0
        %522 = vmatprep.subr.bf16.mxu0 0
        %523 = vmatpush1.bf16.msra.mxu0 0
        %524 = vmatprep.subr.bf16.mxu0 0
        %525 = vmatpush1.bf16.msra.mxu0 0
        %526 = vmatprep.subr.bf16.mxu0 0
        %527 = vmatpush1.bf16.msra.mxu0 0
        %528 = vmatprep.subr.bf16.mxu0 0
        %529 = vmatpush1.bf16.msra.mxu0 0
        %530 = vmatprep.subr.bf16.mxu0 0
        %531 = vmatpush1.bf16.msra.mxu0 0
        %532 = vmatprep.mubr.bf16.mxu0 0
        %533 = vmatmul.mubr.bf16.gmra.mrb[0].mxu0 %v498
        %v534 = vpop.f32.mrb[0].mxu0
        %v535 = vadd.f32 0.0, %v534
        %v536 = vpop.f32.mrb[0].mxu0
        %v537 = vpop.f32.mrb[0].mxu0
        %v538 = vpop.f32.mrb[0].mxu0
        %539 = vdwg.mxu0
        %v540 = vmul.f32 %v475, 0.35355338
        %s541 = smul.u32 %s34, 8
        %v542 = vlaneseq
        %v543 = vshrl.u32 %v542, 7
        %v544 = vstv %s541
        %v545 = vadd.s32 %v544, %v543
        %v546 = vlaneseq
        %v547 = vand.u32 %v546, 127
        %vm548 = vcmp.ge.s32.totalorder %v545, %v547
        %549 = vst.msk [vmem:[#allocation2] sm:$0xff] %vm436, 0.0
        %vm550 = vcmask 64512
        %v552 = vsel %vm550, %v540, 0
        %v555 = vsel %vm550, %v535, 0
        %557 = vmatprep.subr.mxu0 0.0
        %558 = vmatpush1.xpose.msra.mxu0 %v555
        %559 = vmatprep.subr.mxu0 0.0
        %560 = vmatpush1.xpose.msra.mxu0 0.0
        %561 = vmatprep.subr.mxu0 0.0
        %562 = vmatpush1.xpose.msra.mxu0 0.0
        %563 = vmatprep.subr.mxu0 0.0
        %564 = vmatpush1.xpose.msra.mxu0 0.0
        %565 = vmatprep.subr.mxu0 0.0
        %566 = vmatpush1.xpose.msra.mxu0 0.0
        %567 = vmatprep.subr.mxu0 0.0
        %568 = vmatpush1.xpose.msra.mxu0 0.0
        %569 = vmatprep.subr.mxu0 0.0
        %570 = vmatpush1.xpose.msra.mxu0 0.0
        %571 = vmatprep.subr.mxu0 0.0
        %572 = vmatpush1.xpose.msra.mxu0 0.0
        %573 = vmatprep.subr.mxu0 0.0
        %574 = vmatpush1.xpose.msra.mxu0 0.0
        %575 = vmatprep.subr.mxu0 0.0
        %576 = vmatpush1.xpose.msra.mxu0 0.0
        %577 = vmatprep.subr.mxu0 0.0
        %578 = vmatpush1.xpose.msra.mxu0 0.0
        %579 = vmatprep.subr.mxu0 0.0
        %580 = vmatpush1.xpose.msra.mxu0 0.0
        %581 = vmatprep.subr.mxu0 0.0
        %582 = vmatpush1.xpose.msra.mxu0 0.0
        %583 = vmatprep.subr.mxu0 0.0
        %584 = vmatpush1.xpose.msra.mxu0 0.0
        %585 = vmatprep.subr.mxu0 0.0
        %586 = vmatpush1.xpose.msra.mxu0 0.0
        %587 = vmatprep.subr.mxu0 0.0
        %588 = vmatpush1.xpose.msra.mxu0 0.0
        %589 = vmatprep.subr.mxu0 0.0
        %590 = vmatpush1.xpose.msra.mxu0 0.0
        %591 = vmatprep.subr.mxu0 0.0
        %592 = vmatpush1.xpose.msra.mxu0 0.0
        %593 = vmatprep.subr.mxu0 0.0
        %594 = vmatpush1.xpose.msra.mxu0 0.0
        %595 = vmatprep.subr.mxu0 0.0
        %596 = vmatpush1.xpose.msra.mxu0 0.0
        %597 = vmatprep.subr.mxu0 0.0
        %598 = vmatpush1.xpose.msra.mxu0 0.0
        %599 = vmatprep.subr.mxu0 0.0
        %600 = vmatpush1.xpose.msra.mxu0 0.0
        %601 = vmatprep.subr.mxu0 0.0
        %602 = vmatpush1.xpose.msra.mxu0 0.0
        %603 = vmatprep.subr.mxu0 0.0
        %604 = vmatpush1.xpose.msra.mxu0 0.0
        %605 = vmatprep.subr.mxu0 0.0
        %606 = vmatpush1.xpose.msra.mxu0 0.0
        %607 = vmatprep.subr.mxu0 0.0
        %608 = vmatpush1.xpose.msra.mxu0 0.0
        %609 = vmatprep.subr.mxu0 0.0
        %610 = vmatpush1.xpose.msra.mxu0 0.0
        %611 = vmatprep.subr.mxu0 0.0
        %612 = vmatpush1.xpose.msra.mxu0 0.0
        %613 = vmatprep.subr.mxu0 0.0
        %614 = vmatpush1.xpose.msra.mxu0 0.0
        %615 = vmatprep.subr.mxu0 0.0
        %616 = vmatpush1.xpose.msra.mxu0 0.0
        %617 = vmatprep.subr.mxu0 0.0
        %618 = vmatpush1.xpose.msra.mxu0 0.0
        %619 = vmatprep.subr.mxu0 0.0
        %620 = vmatpush1.xpose.msra.mxu0 0.0
        %621 = vmatprep.mubr.f32.mxu0 0.0
        %622 = vmatmul.mubr.f32.gmra.mrb[0].mxu0 %v552
        %v623 = vpop.f32.mrb[0].mxu0
        %v624 = vadd.f32 0.0, %v623
        %v625 = vpop.f32.mrb[0].mxu0
        %626 = vdwg.mxu0
        %v627 = vsel %vm548, %v624, -1e+30
        %v628 = vsel %vm550, %v627, -inf
        %629 = vmax.xlane.f32.xlu0 %v628
        %v630 = vpop.xlane.xlu0 %629
        %v631 = vsub.f32 %v627, %v630
        %v632 = vmul.f32 %v631, 1.442695
        %v633 = vpow.pop %v632
        %v634 = vsel %vm550, %v633, 0.0
        %635 = vadd.xlane.f32.xlu0 %v634
        %v636 = vpop.xlane.xlu0 %635
        %v637 = vrcp.pop %v636
        %v638 = vmul.f32 %v633, %v637
        %v639 = vpack.c.bf16 %v638, %v638
        %v640 = vpack.c.bf16 %v535, %v535
        %642 = vrot.lane.b32.xlu0 %v640, 96
        %v643 = vpop.permute.xlu0 %642
        %v645 = vsel %vm550, %v639, 0
        %vm647 = vcmask 1043456
        %v649 = vsel %vm647, %v643, 0
        %651 = vmatprep.subr.bf16.mxu0 0
        %652 = vmatpush1.bf16.msra.mxu0 %v649
        %653 = vmatprep.subr.bf16.mxu0 0
        %654 = vmatpush1.bf16.msra.mxu0 0
        %655 = vmatprep.subr.bf16.mxu0 0
        %656 = vmatpush1.bf16.msra.mxu0 0
        %657 = vmatprep.subr.bf16.mxu0 0
        %658 = vmatpush1.bf16.msra.mxu0 0
        %659 = vmatprep.subr.bf16.mxu0 0
        %660 = vmatpush1.bf16.msra.mxu0 0
        %661 = vmatprep.subr.bf16.mxu0 0
        %662 = vmatpush1.bf16.msra.mxu0 0
        %663 = vmatprep.subr.bf16.mxu0 0
        %664 = vmatpush1.bf16.msra.mxu0 0
        %665 = vmatprep.subr.bf16.mxu0 0
        %666 = vmatpush1.bf16.msra.mxu0 0
        %667 = vmatprep.subr.bf16.mxu0 0
        %668 = vmatpush1.bf16.msra.mxu0 0
        %669 = vmatprep.subr.bf16.mxu0 0
        %670 = vmatpush1.bf16.msra.mxu0 0
        %671 = vmatprep.subr.bf16.mxu0 0
        %672 = vmatpush1.bf16.msra.mxu0 0
        %673 = vmatprep.subr.bf16.mxu0 0
        %674 = vmatpush1.bf16.msra.mxu0 0
        %675 = vmatprep.subr.bf16.mxu0 0
        %676 = vmatpush1.bf16.msra.mxu0 0
        %677 = vmatprep.subr.bf16.mxu0 0
        %678 = vmatpush1.bf16.msra.mxu0 0
        %679 = vmatprep.subr.bf16.mxu0 0
        %680 = vmatpush1.bf16.msra.mxu0 0
        %681 = vmatprep.subr.bf16.mxu0 0
        %682 = vmatpush1.bf16.msra.mxu0 0
        %683 = vmatprep.mubr.bf16.mxu0 0
        %684 = vmatmul.mubr.bf16.gmra.mrb[0].mxu0 %v645
        %v685 = vpop.f32.mrb[0].mxu0
        %v686 = vadd.f32 0.0, %v685
        %v687 = vpop.f32.mrb[0].mxu0
        %v688 = vpop.f32.mrb[0].mxu0
        %v689 = vpop.f32.mrb[0].mxu0
        %690 = vdwg.mxu0
        %v691 = vld [vmem:[#allocation2] sm:$0xff]
        %v692 = vpack.c.bf16 %v686, %v686
        %v693 = vld [vmem:[#allocation11] sm:$0xf]
        %v695 = vsel %vm550, %v692, 0
        %v698 = vsel %vm647, %v693, 0
        %700 = vmatprep.subr.bf16.mxu0 0
        %701 = vmatpush1.bf16.msra.mxu0 %v698
        %702 = vmatprep.subr.bf16.mxu0 0
        %703 = vmatpush1.bf16.msra.mxu0 0
        %704 = vmatprep.subr.bf16.mxu0 0
        %705 = vmatpush1.bf16.msra.mxu0 0
        %706 = vmatprep.subr.bf16.mxu0 0
        %707 = vmatpush1.bf16.msra.mxu0 0
        %708 = vmatprep.subr.bf16.mxu0 0
        %709 = vmatpush1.bf16.msra.mxu0 0
        %710 = vmatprep.subr.bf16.mxu0 0
        %711 = vmatpush1.bf16.msra.mxu0 0
        %712 = vmatprep.subr.bf16.mxu0 0
        %713 = vmatpush1.bf16.msra.mxu0 0
        %714 = vmatprep.subr.bf16.mxu0 0
        %715 = vmatpush1.bf16.msra.mxu0 0
        %716 = vmatprep.subr.bf16.mxu0 0
        %717 = vmatpush1.bf16.msra.mxu0 0
        %718 = vmatprep.subr.bf16.mxu0 0
        %719 = vmatpush1.bf16.msra.mxu0 0
        %720 = vmatprep.subr.bf16.mxu0 0
        %721 = vmatpush1.bf16.msra.mxu0 0
        %722 = vmatprep.subr.bf16.mxu0 0
        %723 = vmatpush1.bf16.msra.mxu0 0
        %724 = vmatprep.subr.bf16.mxu0 0
        %725 = vmatpush1.bf16.msra.mxu0 0
        %726 = vmatprep.subr.bf16.mxu0 0
        %727 = vmatpush1.bf16.msra.mxu0 0
        %728 = vmatprep.subr.bf16.mxu0 0
        %729 = vmatpush1.bf16.msra.mxu0 0
        %730 = vmatprep.subr.bf16.mxu0 0
        %731 = vmatpush1.bf16.msra.mxu0 0
        %732 = vmatprep.mubr.bf16.mxu0 0
        %733 = vmatmul.mubr.bf16.gmra.mrb[0].mxu0 %v695
        %v734 = vpop.f32.mrb[0].mxu0
        %v735 = vadd.f32 0.0, %v734
        %v736 = vpop.f32.mrb[0].mxu0
        %v737 = vpop.f32.mrb[0].mxu0
        %v738 = vpop.f32.mrb[0].mxu0
        %739 = vdwg.mxu0
        %v740 = vadd.f32 %v691, %v735
        %741 = vst.msk [vmem:[#allocation2] sm:$0xff] %vm436, %v740
        %742 = vrot.lane.b32.xlu0 %v540, 120
        %v743 = vpop.permute.xlu0 %742
        %744 = vrot.lane.b32.xlu0 %v535, 120
        %v745 = vpop.permute.xlu0 %744
        %v746 = vsel %vm550, %v743, 0
        %v748 = vsel %vm550, %v745, 0
        %750 = vmatprep.subr.mxu0 0.0
        %751 = vmatpush1.xpose.msra.mxu0 %v748
        %752 = vmatprep.subr.mxu0 0.0
        %753 = vmatpush1.xpose.msra.mxu0 0.0
        %754 = vmatprep.subr.mxu0 0.0
        %755 = vmatpush1.xpose.msra.mxu0 0.0
        %756 = vmatprep.subr.mxu0 0.0
        %757 = vmatpush1.xpose.msra.mxu0 0.0
        %758 = vmatprep.subr.mxu0 0.0
        %759 = vmatpush1.xpose.msra.mxu0 0.0
        %760 = vmatprep.subr.mxu0 0.0
        %761 = vmatpush1.xpose.msra.mxu0 0.0
        %762 = vmatprep.subr.mxu0 0.0
        %763 = vmatpush1.xpose.msra.mxu0 0.0
        %764 = vmatprep.subr.mxu0 0.0
        %765 = vmatpush1.xpose.msra.mxu0 0.0
        %766 = vmatprep.subr.mxu0 0.0
        %767 = vmatpush1.xpose.msra.mxu0 0.0
        %768 = vmatprep.subr.mxu0 0.0
        %769 = vmatpush1.xpose.msra.mxu0 0.0
        %770 = vmatprep.subr.mxu0 0.0
        %771 = vmatpush1.xpose.msra.mxu0 0.0
        %772 = vmatprep.subr.mxu0 0.0
        %773 = vmatpush1.xpose.msra.mxu0 0.0
        %774 = vmatprep.subr.mxu0 0.0
        %775 = vmatpush1.xpose.msra.mxu0 0.0
        %776 = vmatprep.subr.mxu0 0.0
        %777 = vmatpush1.xpose.msra.mxu0 0.0
        %778 = vmatprep.subr.mxu0 0.0
        %779 = vmatpush1.xpose.msra.mxu0 0.0
        %780 = vmatprep.subr.mxu0 0.0
        %781 = vmatpush1.xpose.msra.mxu0 0.0
        %782 = vmatprep.subr.mxu0 0.0
        %783 = vmatpush1.xpose.msra.mxu0 0.0
        %784 = vmatprep.subr.mxu0 0.0
        %785 = vmatpush1.xpose.msra.mxu0 0.0
        %786 = vmatprep.subr.mxu0 0.0
        %787 = vmatpush1.xpose.msra.mxu0 0.0
        %788 = vmatprep.subr.mxu0 0.0
        %789 = vmatpush1.xpose.msra.mxu0 0.0
        %790 = vmatprep.subr.mxu0 0.0
        %791 = vmatpush1.xpose.msra.mxu0 0.0
        %792 = vmatprep.subr.mxu0 0.0
        %793 = vmatpush1.xpose.msra.mxu0 0.0
        %794 = vmatprep.subr.mxu0 0.0
        %795 = vmatpush1.xpose.msra.mxu0 0.0
        %796 = vmatprep.subr.mxu0 0.0
        %797 = vmatpush1.xpose.msra.mxu0 0.0
        %798 = vmatprep.subr.mxu0 0.0
        %799 = vmatpush1.xpose.msra.mxu0 0.0
        %800 = vmatprep.subr.mxu0 0.0
        %801 = vmatpush1.xpose.msra.mxu0 0.0
        %802 = vmatprep.subr.mxu0 0.0
        %803 = vmatpush1.xpose.msra.mxu0 0.0
        %804 = vmatprep.subr.mxu0 0.0
        %805 = vmatpush1.xpose.msra.mxu0 0.0
        %806 = vmatprep.subr.mxu0 0.0
        %807 = vmatpush1.xpose.msra.mxu0 0.0
        %808 = vmatprep.subr.mxu0 0.0
        %809 = vmatpush1.xpose.msra.mxu0 0.0
        %810 = vmatprep.subr.mxu0 0.0
        %811 = vmatpush1.xpose.msra.mxu0 0.0
        %812 = vmatprep.subr.mxu0 0.0
        %813 = vmatpush1.xpose.msra.mxu0 0.0
        %814 = vmatprep.mubr.f32.mxu0 0.0
        %815 = vmatmul.mubr.f32.gmra.mrb[0].mxu0 %v746
        %v816 = vpop.f32.mrb[0].mxu0
        %v817 = vadd.f32 0.0, %v816
        %v818 = vpop.f32.mrb[0].mxu0
        %819 = vdwg.mxu0
        %v820 = vsel %vm548, %v817, -1e+30
        %v821 = vsel %vm550, %v820, -inf
        %822 = vmax.xlane.f32.xlu0 %v821
        %v823 = vpop.xlane.xlu0 %822
        %v824 = vsub.f32 %v820, %v823
        %v825 = vmul.f32 %v824, 1.442695
        %v826 = vpow.pop %v825
        %v827 = vsel %vm550, %v826, 0.0
        %828 = vadd.xlane.f32.xlu0 %v827
        %v829 = vpop.xlane.xlu0 %828
        %v830 = vrcp.pop %v829
        %v831 = vmul.f32 %v826, %v830
        %v832 = vpack.c.bf16 %v831, %v831
        %833 = vrot.lane.b32.xlu0 %v640, 88
        %v834 = vpop.permute.xlu0 %833
        %v836 = vsel %vm550, %v832, 0
        %v839 = vsel %vm647, %v834, 0
        %841 = vmatprep.subr.bf16.mxu0 0
        %842 = vmatpush1.bf16.msra.mxu0 %v839
        %843 = vmatprep.subr.bf16.mxu0 0
        %844 = vmatpush1.bf16.msra.mxu0 0
        %845 = vmatprep.subr.bf16.mxu0 0
        %846 = vmatpush1.bf16.msra.mxu0 0
        %847 = vmatprep.subr.bf16.mxu0 0
        %848 = vmatpush1.bf16.msra.mxu0 0
        %849 = vmatprep.subr.bf16.mxu0 0
        %850 = vmatpush1.bf16.msra.mxu0 0
        %851 = vmatprep.subr.bf16.mxu0 0
        %852 = vmatpush1.bf16.msra.mxu0 0
        %853 = vmatprep.subr.bf16.mxu0 0
        %854 = vmatpush1.bf16.msra.mxu0 0
        %855 = vmatprep.subr.bf16.mxu0 0
        %856 = vmatpush1.bf16.msra.mxu0 0
        %857 = vmatprep.subr.bf16.mxu0 0
        %858 = vmatpush1.bf16.msra.mxu0 0
        %859 = vmatprep.subr.bf16.mxu0 0
        %860 = vmatpush1.bf16.msra.mxu0 0
        %861 = vmatprep.subr.bf16.mxu0 0
        %862 = vmatpush1.bf16.msra.mxu0 0
        %863 = vmatprep.subr.bf16.mxu0 0
        %864 = vmatpush1.bf16.msra.mxu0 0
        %865 = vmatprep.subr.bf16.mxu0 0
        %866 = vmatpush1.bf16.msra.mxu0 0
        %867 = vmatprep.subr.bf16.mxu0 0
        %868 = vmatpush1.bf16.msra.mxu0 0
        %869 = vmatprep.subr.bf16.mxu0 0
        %870 = vmatpush1.bf16.msra.mxu0 0
        %871 = vmatprep.subr.bf16.mxu0 0
        %872 = vmatpush1.bf16.msra.mxu0 0
        %873 = vmatprep.mubr.bf16.mxu0 0
        %874 = vmatmul.mubr.bf16.gmra.mrb[0].mxu0 %v836
        %v875 = vpop.f32.mrb[0].mxu0
        %v876 = vadd.f32 0.0, %v875
        %v877 = vpop.f32.mrb[0].mxu0
        %v878 = vpop.f32.mrb[0].mxu0
        %v879 = vpop.f32.mrb[0].mxu0
        %880 = vdwg.mxu0
        %v881 = vld [vmem:[#allocation2] sm:$0xff]
        %v882 = vpack.c.bf16 %v876, %v876
        %s883 = scalar_lea.vmem [#allocation11], 4
        %v884 = vld [vmem:[%s883] sm:$0xf]
        %v886 = vsel %vm550, %v882, 0
        %v889 = vsel %vm647, %v884, 0
        %891 = vmatprep.subr.bf16.mxu0 0
        %892 = vmatpush1.bf16.msra.mxu0 %v889
        %893 = vmatprep.subr.bf16.mxu0 0
        %894 = vmatpush1.bf16.msra.mxu0 0
        %895 = vmatprep.subr.bf16.mxu0 0
        %896 = vmatpush1.bf16.msra.mxu0 0
        %897 = vmatprep.subr.bf16.mxu0 0
        %898 = vmatpush1.bf16.msra.mxu0 0
        %899 = vmatprep.subr.bf16.mxu0 0
        %900 = vmatpush1.bf16.msra.mxu0 0
        %901 = vmatprep.subr.bf16.mxu0 0
        %902 = vmatpush1.bf16.msra.mxu0 0
        %903 = vmatprep.subr.bf16.mxu0 0
        %904 = vmatpush1.bf16.msra.mxu0 0
        %905 = vmatprep.subr.bf16.mxu0 0
        %906 = vmatpush1.bf16.msra.mxu0 0
        %907 = vmatprep.subr.bf16.mxu0 0
        %908 = vmatpush1.bf16.msra.mxu0 0
        %909 = vmatprep.subr.bf16.mxu0 0
        %910 = vmatpush1.bf16.msra.mxu0 0
        %911 = vmatprep.subr.bf16.mxu0 0
        %912 = vmatpush1.bf16.msra.mxu0 0
        %913 = vmatprep.subr.bf16.mxu0 0
        %914 = vmatpush1.bf16.msra.mxu0 0
        %915 = vmatprep.subr.bf16.mxu0 0
        %916 = vmatpush1.bf16.msra.mxu0 0
        %917 = vmatprep.subr.bf16.mxu0 0
        %918 = vmatpush1.bf16.msra.mxu0 0
        %919 = vmatprep.subr.bf16.mxu0 0
        %920 = vmatpush1.bf16.msra.mxu0 0
        %921 = vmatprep.subr.bf16.mxu0 0
        %922 = vmatpush1.bf16.msra.mxu0 0
        %923 = vmatprep.mubr.bf16.mxu0 0
        %924 = vmatmul.mubr.bf16.gmra.mrb[0].mxu0 %v886
        %v925 = vpop.f32.mrb[0].mxu0
        %v926 = vadd.f32 0.0, %v925
        %v927 = vpop.f32.mrb[0].mxu0
        %v928 = vpop.f32.mrb[0].mxu0
        %v929 = vpop.f32.mrb[0].mxu0
        %930 = vdwg.mxu0
        %v931 = vadd.f32 %v881, %v926
        %932 = vst.msk [vmem:[#allocation2] sm:$0xff] %vm436, %v931
        %933 = vrot.lane.b32.xlu0 %v540, 112
        %v934 = vpop.permute.xlu0 %933
        %935 = vrot.lane.b32.xlu0 %v535, 112
        %v936 = vpop.permute.xlu0 %935
        %v937 = vsel %vm550, %v934, 0
        %v939 = vsel %vm550, %v936, 0
        %941 = vmatprep.subr.mxu0 0.0
        %942 = vmatpush1.xpose.msra.mxu0 %v939
        %943 = vmatprep.subr.mxu0 0.0
        %944 = vmatpush1.xpose.msra.mxu0 0.0
        %945 = vmatprep.subr.mxu0 0.0
        %946 = vmatpush1.xpose.msra.mxu0 0.0
        %947 = vmatprep.subr.mxu0 0.0
        %948 = vmatpush1.xpose.msra.mxu0 0.0
        %949 = vmatprep.subr.mxu0 0.0
        %950 = vmatpush1.xpose.msra.mxu0 0.0
        %951 = vmatprep.subr.mxu0 0.0
        %952 = vmatpush1.xpose.msra.mxu0 0.0
        %953 = vmatprep.subr.mxu0 0.0
        %954 = vmatpush1.xpose.msra.mxu0 0.0
        %955 = vmatprep.subr.mxu0 0.0
        %956 = vmatpush1.xpose.msra.mxu0 0.0
        %957 = vmatprep.subr.mxu0 0.0
        %958 = vmatpush1.xpose.msra.mxu0 0.0
        %959 = vmatprep.subr.mxu0 0.0
        %960 = vmatpush1.xpose.msra.mxu0 0.0
        %961 = vmatprep.subr.mxu0 0.0
        %962 = vmatpush1.xpose.msra.mxu0 0.0
        %963 = vmatprep.subr.mxu0 0.0
        %964 = vmatpush1.xpose.msra.mxu0 0.0
        %965 = vmatprep.subr.mxu0 0.0
        %966 = vmatpush1.xpose.msra.mxu0 0.0
        %967 = vmatprep.subr.mxu0 0.0
        %968 = vmatpush1.xpose.msra.mxu0 0.0
        %969 = vmatprep.subr.mxu0 0.0
        %970 = vmatpush1.xpose.msra.mxu0 0.0
        %971 = vmatprep.subr.mxu0 0.0
        %972 = vmatpush1.xpose.msra.mxu0 0.0
        %973 = vmatprep.subr.mxu0 0.0
        %974 = vmatpush1.xpose.msra.mxu0 0.0
        %975 = vmatprep.subr.mxu0 0.0
        %976 = vmatpush1.xpose.msra.mxu0 0.0
        %977 = vmatprep.subr.mxu0 0.0
        %978 = vmatpush1.xpose.msra.mxu0 0.0
        %979 = vmatprep.subr.mxu0 0.0
        %980 = vmatpush1.xpose.msra.mxu0 0.0
        %981 = vmatprep.subr.mxu0 0.0
        %982 = vmatpush1.xpose.msra.mxu0 0.0
        %983 = vmatprep.subr.mxu0 0.0
        %984 = vmatpush1.xpose.msra.mxu0 0.0
        %985 = vmatprep.subr.mxu0 0.0
        %986 = vmatpush1.xpose.msra.mxu0 0.0
        %987 = vmatprep.subr.mxu0 0.0
        %988 = vmatpush1.xpose.msra.mxu0 0.0
        %989 = vmatprep.subr.mxu0 0.0
        %990 = vmatpush1.xpose.msra.mxu0 0.0
        %991 = vmatprep.subr.mxu0 0.0
        %992 = vmatpush1.xpose.msra.mxu0 0.0
        %993 = vmatprep.subr.mxu0 0.0
        %994 = vmatpush1.xpose.msra.mxu0 0.0
        %995 = vmatprep.subr.mxu0 0.0
        %996 = vmatpush1.xpose.msra.mxu0 0.0
        %997 = vmatprep.subr.mxu0 0.0
        %998 = vmatpush1.xpose.msra.mxu0 0.0
        %999 = vmatprep.subr.mxu0 0.0
        %1000 = vmatpush1.xpose.msra.mxu0 0.0
        %1001 = vmatprep.subr.mxu0 0.0
        %1002 = vmatpush1.xpose.msra.mxu0 0.0
        %1003 = vmatprep.subr.mxu0 0.0
        %1004 = vmatpush1.xpose.msra.mxu0 0.0
        %1005 = vmatprep.mubr.f32.mxu0 0.0
        %1006 = vmatmul.mubr.f32.gmra.mrb[0].mxu0 %v937
        %v1007 = vpop.f32.mrb[0].mxu0
        %v1008 = vadd.f32 0.0, %v1007
        %v1009 = vpop.f32.mrb[0].mxu0
        %1010 = vdwg.mxu0
        %v1011 = vsel %vm548, %v1008, -1e+30
        %v1012 = vsel %vm550, %v1011, -inf
        %1013 = vmax.xlane.f32.xlu0 %v1012
        %v1014 = vpop.xlane.xlu0 %1013
        %v1015 = vsub.f32 %v1011, %v1014
        %v1016 = vmul.f32 %v1015, 1.442695
        %v1017 = vpow.pop %v1016
        %v1018 = vsel %vm550, %v1017, 0.0
        %1019 = vadd.xlane.f32.xlu0 %v1018
        %v1020 = vpop.xlane.xlu0 %1019
        %v1021 = vrcp.pop %v1020
        %v1022 = vmul.f32 %v1017, %v1021
        %v1023 = vpack.c.bf16 %v1022, %v1022
        %1024 = vrot.lane.b32.xlu0 %v640, 80
        %v1025 = vpop.permute.xlu0 %1024
        %v1027 = vsel %vm550, %v1023, 0
        %v1030 = vsel %vm647, %v1025, 0
        %1032 = vmatprep.subr.bf16.mxu0 0
        %1033 = vmatpush1.bf16.msra.mxu0 %v1030
        %1034 = vmatprep.subr.bf16.mxu0 0
        %1035 = vmatpush1.bf16.msra.mxu0 0
        %1036 = vmatprep.subr.bf16.mxu0 0
        %1037 = vmatpush1.bf16.msra.mxu0 0
        %1038 = vmatprep.subr.bf16.mxu0 0
        %1039 = vmatpush1.bf16.msra.mxu0 0
        %1040 = vmatprep.subr.bf16.mxu0 0
        %1041 = vmatpush1.bf16.msra.mxu0 0
        %1042 = vmatprep.subr.bf16.mxu0 0
        %1043 = vmatpush1.bf16.msra.mxu0 0
        %1044 = vmatprep.subr.bf16.mxu0 0
        %1045 = vmatpush1.bf16.msra.mxu0 0
        %1046 = vmatprep.subr.bf16.mxu0 0
        %1047 = vmatpush1.bf16.msra.mxu0 0
        %1048 = vmatprep.subr.bf16.mxu0 0
        %1049 = vmatpush1.bf16.msra.mxu0 0
        %1050 = vmatprep.subr.bf16.mxu0 0
        %1051 = vmatpush1.bf16.msra.mxu0 0
        %1052 = vmatprep.subr.bf16.mxu0 0
        %1053 = vmatpush1.bf16.msra.mxu0 0
        %1054 = vmatprep.subr.bf16.mxu0 0
        %1055 = vmatpush1.bf16.msra.mxu0 0
        %1056 = vmatprep.subr.bf16.mxu0 0
        %1057 = vmatpush1.bf16.msra.mxu0 0
        %1058 = vmatprep.subr.bf16.mxu0 0
        %1059 = vmatpush1.bf16.msra.mxu0 0
        %1060 = vmatprep.subr.bf16.mxu0 0
        %1061 = vmatpush1.bf16.msra.mxu0 0
        %1062 = vmatprep.subr.bf16.mxu0 0
        %1063 = vmatpush1.bf16.msra.mxu0 0
        %1064 = vmatprep.mubr.bf16.mxu0 0
        %1065 = vmatmul.mubr.bf16.gmra.mrb[0].mxu0 %v1027
        %v1066 = vpop.f32.mrb[0].mxu0
        %v1067 = vadd.f32 0.0, %v1066
        %v1068 = vpop.f32.mrb[0].mxu0
        %v1069 = vpop.f32.mrb[0].mxu0
        %v1070 = vpop.f32.mrb[0].mxu0
        %1071 = vdwg.mxu0
        %v1072 = vld [vmem:[#allocation2] sm:$0xff]
        %v1073 = vpack.c.bf16 %v1067, %v1067
        %s1074 = scalar_lea.vmem [#allocation11], 8
        %v1075 = vld [vmem:[%s1074] sm:$0xf]
        %v1077 = vsel %vm550, %v1073, 0
        %v1080 = vsel %vm647, %v1075, 0
        %1082 = vmatprep.subr.bf16.mxu0 0
        %1083 = vmatpush1.bf16.msra.mxu0 %v1080
        %1084 = vmatprep.subr.bf16.mxu0 0
        %1085 = vmatpush1.bf16.msra.mxu0 0
        %1086 = vmatprep.subr.bf16.mxu0 0
        %1087 = vmatpush1.bf16.msra.mxu0 0
        %1088 = vmatprep.subr.bf16.mxu0 0
        %1089 = vmatpush1.bf16.msra.mxu0 0
        %1090 = vmatprep.subr.bf16.mxu0 0
        %1091 = vmatpush1.bf16.msra.mxu0 0
        %1092 = vmatprep.subr.bf16.mxu0 0
        %1093 = vmatpush1.bf16.msra.mxu0 0
        %1094 = vmatprep.subr.bf16.mxu0 0
        %1095 = vmatpush1.bf16.msra.mxu0 0
        %1096 = vmatprep.subr.bf16.mxu0 0
        %1097 = vmatpush1.bf16.msra.mxu0 0
        %1098 = vmatprep.subr.bf16.mxu0 0
        %1099 = vmatpush1.bf16.msra.mxu0 0
        %1100 = vmatprep.subr.bf16.mxu0 0
        %1101 = vmatpush1.bf16.msra.mxu0 0
        %1102 = vmatprep.subr.bf16.mxu0 0
        %1103 = vmatpush1.bf16.msra.mxu0 0
        %1104 = vmatprep.subr.bf16.mxu0 0
        %1105 = vmatpush1.bf16.msra.mxu0 0
        %1106 = vmatprep.subr.bf16.mxu0 0
        %1107 = vmatpush1.bf16.msra.mxu0 0
        %1108 = vmatprep.subr.bf16.mxu0 0
        %1109 = vmatpush1.bf16.msra.mxu0 0
        %1110 = vmatprep.subr.bf16.mxu0 0
        %1111 = vmatpush1.bf16.msra.mxu0 0
        %1112 = vmatprep.subr.bf16.mxu0 0
        %1113 = vmatpush1.bf16.msra.mxu0 0
        %1114 = vmatprep.mubr.bf16.mxu0 0
        %1115 = vmatmul.mubr.bf16.gmra.mrb[0].mxu0 %v1077
        %v1116 = vpop.f32.mrb[0].mxu0
        %v1117 = vadd.f32 0.0, %v1116
        %v1118 = vpop.f32.mrb[0].mxu0
        %v1119 = vpop.f32.mrb[0].mxu0
        %v1120 = vpop.f32.mrb[0].mxu0
        %1121 = vdwg.mxu0
        %v1122 = vadd.f32 %v1072, %v1117
        %1123 = vst.msk [vmem:[#allocation2] sm:$0xff] %vm436, %v1122
        %1124 = vrot.lane.b32.xlu0 %v540, 104
        %v1125 = vpop.permute.xlu0 %1124
        %1126 = vrot.lane.b32.xlu0 %v535, 104
        %v1127 = vpop.permute.xlu0 %1126
        %v1128 = vsel %vm550, %v1125, 0
        %v1130 = vsel %vm550, %v1127, 0
        %1132 = vmatprep.subr.mxu0 0.0
        %1133 = vmatpush1.xpose.msra.mxu0 %v1130
        %1134 = vmatprep.subr.mxu0 0.0
        %1135 = vmatpush1.xpose.msra.mxu0 0.0
        %1136 = vmatprep.subr.mxu0 0.0
        %1137 = vmatpush1.xpose.msra.mxu0 0.0
        %1138 = vmatprep.subr.mxu0 0.0
        %1139 = vmatpush1.xpose.msra.mxu0 0.0
        %1140 = vmatprep.subr.mxu0 0.0
        %1141 = vmatpush1.xpose.msra.mxu0 0.0
        %1142 = vmatprep.subr.mxu0 0.0
        %1143 = vmatpush1.xpose.msra.mxu0 0.0
        %1144 = vmatprep.subr.mxu0 0.0
        %1145 = vmatpush1.xpose.msra.mxu0 0.0
        %1146 = vmatprep.subr.mxu0 0.0
        %1147 = vmatpush1.xpose.msra.mxu0 0.0
        %1148 = vmatprep.subr.mxu0 0.0
        %1149 = vmatpush1.xpose.msra.mxu0 0.0
        %1150 = vmatprep.subr.mxu0 0.0
        %1151 = vmatpush1.xpose.msra.mxu0 0.0
        %1152 = vmatprep.subr.mxu0 0.0
        %1153 = vmatpush1.xpose.msra.mxu0 0.0
        %1154 = vmatprep.subr.mxu0 0.0
        %1155 = vmatpush1.xpose.msra.mxu0 0.0
        %1156 = vmatprep.subr.mxu0 0.0
        %1157 = vmatpush1.xpose.msra.mxu0 0.0
        %1158 = vmatprep.subr.mxu0 0.0
        %1159 = vmatpush1.xpose.msra.mxu0 0.0
        %1160 = vmatprep.subr.mxu0 0.0
        %1161 = vmatpush1.xpose.msra.mxu0 0.0
        %1162 = vmatprep.subr.mxu0 0.0
        %1163 = vmatpush1.xpose.msra.mxu0 0.0
        %1164 = vmatprep.subr.mxu0 0.0
        %1165 = vmatpush1.xpose.msra.mxu0 0.0
        %1166 = vmatprep.subr.mxu0 0.0
        %1167 = vmatpush1.xpose.msra.mxu0 0.0
        %1168 = vmatprep.subr.mxu0 0.0
        %1169 = vmatpush1.xpose.msra.mxu0 0.0
        %1170 = vmatprep.subr.mxu0 0.0
        %1171 = vmatpush1.xpose.msra.mxu0 0.0
        %1172 = vmatprep.subr.mxu0 0.0
        %1173 = vmatpush1.xpose.msra.mxu0 0.0
        %1174 = vmatprep.subr.mxu0 0.0
        %1175 = vmatpush1.xpose.msra.mxu0 0.0
        %1176 = vmatprep.subr.mxu0 0.0
        %1177 = vmatpush1.xpose.msra.mxu0 0.0
        %1178 = vmatprep.subr.mxu0 0.0
        %1179 = vmatpush1.xpose.msra.mxu0 0.0
        %1180 = vmatprep.subr.mxu0 0.0
        %1181 = vmatpush1.xpose.msra.mxu0 0.0
        %1182 = vmatprep.subr.mxu0 0.0
        %1183 = vmatpush1.xpose.msra.mxu0 0.0
        %1184 = vmatprep.subr.mxu0 0.0
        %1185 = vmatpush1.xpose.msra.mxu0 0.0
        %1186 = vmatprep.subr.mxu0 0.0
        %1187 = vmatpush1.xpose.msra.mxu0 0.0
        %1188 = vmatprep.subr.mxu0 0.0
        %1189 = vmatpush1.xpose.msra.mxu0 0.0
        %1190 = vmatprep.subr.mxu0 0.0
        %1191 = vmatpush1.xpose.msra.mxu0 0.0
        %1192 = vmatprep.subr.mxu0 0.0
        %1193 = vmatpush1.xpose.msra.mxu0 0.0
        %1194 = vmatprep.subr.mxu0 0.0
        %1195 = vmatpush1.xpose.msra.mxu0 0.0
        %1196 = vmatprep.mubr.f32.mxu0 0.0
        %1197 = vmatmul.mubr.f32.gmra.mrb[0].mxu0 %v1128
        %v1198 = vpop.f32.mrb[0].mxu0
        %v1199 = vadd.f32 0.0, %v1198
        %v1200 = vpop.f32.mrb[0].mxu0
        %1201 = vdwg.mxu0
        %v1202 = vsel %vm548, %v1199, -1e+30
        %v1203 = vsel %vm550, %v1202, -inf
        %1204 = vmax.xlane.f32.xlu0 %v1203
        %v1205 = vpop.xlane.xlu0 %1204
        %v1206 = vsub.f32 %v1202, %v1205
        %v1207 = vmul.f32 %v1206, 1.442695
        %v1208 = vpow.pop %v1207
        %v1209 = vsel %vm550, %v1208, 0.0
        %1210 = vadd.xlane.f32.xlu0 %v1209
        %v1211 = vpop.xlane.xlu0 %1210
        %v1212 = vrcp.pop %v1211
        %v1213 = vmul.f32 %v1208, %v1212
        %v1214 = vpack.c.bf16 %v1213, %v1213
        %1215 = vrot.lane.b32.xlu0 %v640, 72
        %v1216 = vpop.permute.xlu0 %1215
        %v1218 = vsel %vm550, %v1214, 0
        %v1221 = vsel %vm647, %v1216, 0
        %1223 = vmatprep.subr.bf16.mxu0 0
        %1224 = vmatpush1.bf16.msra.mxu0 %v1221
        %1225 = vmatprep.subr.bf16.mxu0 0
        %1226 = vmatpush1.bf16.msra.mxu0 0
        %1227 = vmatprep.subr.bf16.mxu0 0
        %1228 = vmatpush1.bf16.msra.mxu0 0
        %1229 = vmatprep.subr.bf16.mxu0 0
        %1230 = vmatpush1.bf16.msra.mxu0 0
        %1231 = vmatprep.subr.bf16.mxu0 0
        %1232 = vmatpush1.bf16.msra.mxu0 0
        %1233 = vmatprep.subr.bf16.mxu0 0
        %1234 = vmatpush1.bf16.msra.mxu0 0
        %1235 = vmatprep.subr.bf16.mxu0 0
        %1236 = vmatpush1.bf16.msra.mxu0 0
        %1237 = vmatprep.subr.bf16.mxu0 0
        %1238 = vmatpush1.bf16.msra.mxu0 0
        %1239 = vmatprep.subr.bf16.mxu0 0
        %1240 = vmatpush1.bf16.msra.mxu0 0
        %1241 = vmatprep.subr.bf16.mxu0 0
        %1242 = vmatpush1.bf16.msra.mxu0 0
        %1243 = vmatprep.subr.bf16.mxu0 0
        %1244 = vmatpush1.bf16.msra.mxu0 0
        %1245 = vmatprep.subr.bf16.mxu0 0
        %1246 = vmatpush1.bf16.msra.mxu0 0
        %1247 = vmatprep.subr.bf16.mxu0 0
        %1248 = vmatpush1.bf16.msra.mxu0 0
        %1249 = vmatprep.subr.bf16.mxu0 0
        %1250 = vmatpush1.bf16.msra.mxu0 0
        %1251 = vmatprep.subr.bf16.mxu0 0
        %1252 = vmatpush1.bf16.msra.mxu0 0
        %1253 = vmatprep.subr.bf16.mxu0 0
        %1254 = vmatpush1.bf16.msra.mxu0 0
        %1255 = vmatprep.mubr.bf16.mxu0 0
        %1256 = vmatmul.mubr.bf16.gmra.mrb[0].mxu0 %v1218
        %v1257 = vpop.f32.mrb[0].mxu0
        %v1258 = vadd.f32 0.0, %v1257
        %v1259 = vpop.f32.mrb[0].mxu0
        %v1260 = vpop.f32.mrb[0].mxu0
        %v1261 = vpop.f32.mrb[0].mxu0
        %1262 = vdwg.mxu0
        %v1263 = vld [vmem:[#allocation2] sm:$0xff]
        %v1264 = vpack.c.bf16 %v1258, %v1258
        %s1265 = scalar_lea.vmem [#allocation11], 12
        %v1266 = vld [vmem:[%s1265] sm:$0xf]
        %v1268 = vsel %vm550, %v1264, 0
        %v1271 = vsel %vm647, %v1266, 0
        %1273 = vmatprep.subr.bf16.mxu0 0
        %1274 = vmatpush1.bf16.msra.mxu0 %v1271
        %1275 = vmatprep.subr.bf16.mxu0 0
        %1276 = vmatpush1.bf16.msra.mxu0 0
        %1277 = vmatprep.subr.bf16.mxu0 0
        %1278 = vmatpush1.bf16.msra.mxu0 0
        %1279 = vmatprep.subr.bf16.mxu0 0
        %1280 = vmatpush1.bf16.msra.mxu0 0
        %1281 = vmatprep.subr.bf16.mxu0 0
        %1282 = vmatpush1.bf16.msra.mxu0 0
        %1283 = vmatprep.subr.bf16.mxu0 0
        %1284 = vmatpush1.bf16.msra.mxu0 0
        %1285 = vmatprep.subr.bf16.mxu0 0
        %1286 = vmatpush1.bf16.msra.mxu0 0
        %1287 = vmatprep.subr.bf16.mxu0 0
        %1288 = vmatpush1.bf16.msra.mxu0 0
        %1289 = vmatprep.subr.bf16.mxu0 0
        %1290 = vmatpush1.bf16.msra.mxu0 0
        %1291 = vmatprep.subr.bf16.mxu0 0
        %1292 = vmatpush1.bf16.msra.mxu0 0
        %1293 = vmatprep.subr.bf16.mxu0 0
        %1294 = vmatpush1.bf16.msra.mxu0 0
        %1295 = vmatprep.subr.bf16.mxu0 0
        %1296 = vmatpush1.bf16.msra.mxu0 0
        %1297 = vmatprep.subr.bf16.mxu0 0
        %1298 = vmatpush1.bf16.msra.mxu0 0
        %1299 = vmatprep.subr.bf16.mxu0 0
        %1300 = vmatpush1.bf16.msra.mxu0 0
        %1301 = vmatprep.subr.bf16.mxu0 0
        %1302 = vmatpush1.bf16.msra.mxu0 0
        %1303 = vmatprep.subr.bf16.mxu0 0
        %1304 = vmatpush1.bf16.msra.mxu0 0
        %1305 = vmatprep.mubr.bf16.mxu0 0
        %1306 = vmatmul.mubr.bf16.gmra.mrb[0].mxu0 %v1268
        %v1307 = vpop.f32.mrb[0].mxu0
        %v1308 = vadd.f32 0.0, %v1307
        %v1309 = vpop.f32.mrb[0].mxu0
        %v1310 = vpop.f32.mrb[0].mxu0
        %v1311 = vpop.f32.mrb[0].mxu0
        %1312 = vdwg.mxu0
        %v1313 = vadd.f32 %v1263, %v1308
        %1314 = vst.msk [vmem:[#allocation2] sm:$0xff] %vm436, %v1313
        %v1315 = vld [vmem:[#allocation2] sm:$0xff]
        %v1316 = vadd.f32 %v1315, %v417
        %v1317 = vsel %vm436, %v1316, 0.0
        %1318 = vadd.xlane.f32.xlu0 %v1317
        %v1319 = vpop.xlane.xlu0 %1318
        %v1320 = vrcp.pop 32.0
        %v1321 = vmul.f32 %v1319, %v1320
        %v1322 = vsub.f32 %v1316, %v1321
        %v1323 = vmul.f32 %v1322, %v1322
        %v1324 = vsel %vm436, %v1323, 0.0
        %1325 = vadd.xlane.f32.xlu0 %v1324
        %v1326 = vpop.xlane.xlu0 %1325
        %v1327 = vmul.f32 %v1326, %v1320
        %v1328 = vadd.f32 %v1327, 1e-05
        %v1329 = vrsqrt.pop %v1328
        %v1330 = vmul.f32 %v1322, %v1329
        %v1331 = vld [vmem:[#allocation12] sm:$0x1]
        %v1333 = vlaneseq
        %v1334 = vshrl.u32 %v1333, 7
        %v1335 = vsub.s32 0, %v1334
        %v1336 = vrot.slane %v1331, %v1335
        %v1338 = vmul.f32 %v1330, %v1336
        %v1339 = vld [vmem:[#allocation14] sm:$0x1]
        %v1341 = vlaneseq
        %v1342 = vshrl.u32 %v1341, 7
        %v1343 = vsub.s32 0, %v1342
        %v1344 = vrot.slane %v1339, %v1343
        %v1346 = vadd.f32 %v1338, %v1344
        %1347 = vst.msk [vmem:[%s415] sm:$0xff] %vm436, %v1346
        %s1348 = sand.u32 %s210, 1
        %s1349 = scalar_lea.sflag [#allocation5], %s1348
        %s1350 = sand.u32 %s210, 1
        %s1351 = smul.addr %s1350, 8
        %s1352 = scalar_lea.vmem [#allocation15], %s1351
        // Predicated region
        $region77: #{tpu_custom_call.1} parent=47 // pred_check
          %p1353 = pneg %p220
        $region78: #{tpu_custom_call.1} parent=47 // pred_check_branch
          %1355 = sbr.rel (%p1353) target = $region80
        $region79: #{tpu_custom_call.1} parent=47 // pred_region
          %s1357 = ssub.s32 128, 128
          %1358 = vsyncadd %s1349, %s1357
          %s1359 = sadd.s32 %s34, %s33
          %s1360 = smul.addr %s1359, 128
          %s1361 = scalar_lea.hbm %s7, %s1360
          %s1363 = sshll.u32 %s1352, 4
          %s1364 = int_to_ptr.vmem [resolvable:$true] %s1363
          %1366 = dma.vmem_to_hbm [thread:$0]  %s1364, 128, %s1361, %s1349
        $region80: #{tpu_custom_call.1} parent=47 // pred_fallthru
          _
      $region48: #{tpu_custom_call.1} parent=5 // pred_fallthru
        _
      %p1367 = scmp.le.s32.totalorder 2, %s24
      // Predicated region
      $region81: #{tpu_custom_call.1} parent=5 // pred_check
        %p1368 = pneg %p1367
      $region82: #{tpu_custom_call.1} parent=5 // pred_check_branch
        %1370 = sbr.rel (%p1368) target = $region84
      $region83: #{tpu_custom_call.1} parent=5 // pred_region
        %s1371 = ssub.s32 %s24, 2
        // Predicated region
        $region85: #{tpu_custom_call.1} parent=83 // pred_check
          %p1372 = pneg %p226
        $region86: #{tpu_custom_call.1} parent=83 // pred_check_branch
          %1374 = sbr.rel (%p1372) target = $region88
        $region87: #{tpu_custom_call.1} parent=83 // pred_region
          %s1375 = sand.u32 %s211, 1
          %s1376 = scalar_lea.sflag [#allocation5], %s1375
          %s1377 = sand.u32 %s211, 1
          %s1378 = smul.addr %s1377, 8
          %s1379 = scalar_lea.vmem [#allocation15], %s1378
          %1380 = dma.done %s1376, 128
        $region88: #{tpu_custom_call.1} parent=83 // pred_fallthru
          _
      $region84: #{tpu_custom_call.1} parent=5 // pred_fallthru
        _
    $region6: #{tpu_custom_call.1} parent=1 // loop_footer
      %s28 = sadd.s32 1, %s24
    $region7: #{tpu_custom_call.1} parent=1 // loop_footer_branch
      %23 = sbr.rel target = $region3
    $region8: #{tpu_custom_call.1} parent=1 // loop_exit
      _
    %1381 = vsyncpa [#allocation4], 1
    %s1382 = scalar_lea.sflag [#allocation4], 1
    %1383 = vsyncpa %s1382, 1
    %1384 = vsyncpa [#allocation7], 1
    %s1385 = scalar_lea.sflag [#allocation7], 1
    %1386 = vsyncpa %s1385, 1
    %1387 = vsyncpa [#allocation10], 1
    %1388 = vsyncpa [#allocation13], 1
    %1389 = vsyncpa [#allocation5], 1
    %s1390 = scalar_lea.sflag [#allocation5], 1
    %1391 = vsyncpa %s1390, 1

</llo_original>
